<compile_context>
chip_gen: v7x
topology: tpu7x:2x2x1
jax: 0.10.0
libtpu: 0.0.40
codegen_flags: <defaults>
</compile_context>

<pallas_src>
from functools import partial

import jax
import jax.numpy as jnp
import numpy as np
from jax.experimental import pallas as pl
from jax.experimental.pallas import tpu as pltpu


def _poly_act_kernel(C, d, x_ref, w_ref, v_ref, s_ref, o_ref):
    """One batch tile of rows; all C classes per invocation, class-major output.

    x_ref : (tn, d)    input rows tile (VMEM)
    w_ref : (d, C*d)   a * W_c concatenated along the output axis (resident)
    v_ref : (1, C*d)   b * v_c concatenated (resident)
    s_ref : (C, 1)     c * Z_tilde[:, -1, -1] (resident)
    o_ref : (C, tn)    class-major output tile (lane-dense stores)
    """
    x = x_ref[...]                                                   # (tn, d)

    # One wide MXU matmul for all classes; the (pre-scaled) linear weights ride
    # along as a broadcast bias:  y[n, c*d+k] = a*(x @ W_c)[n,k] + b*v_c[k]
    y = jnp.dot(x, w_ref[...], preferred_element_type=jnp.float32) + v_ref[...]

    # prod[n, c*d+k] = x[n,k] * y[n, c*d+k]  (lane replication + VPU multiply;
    # no per-class XLU reduces, no width-1 intermediates, no concat)
    prod = jnp.tile(x, (1, C)) * y                                   # (tn, C*d)

    # Block-diagonal 0/1 selector generated in-register (no HBM DMA, no VMEM
    # double-buffer):  sel[c, c*d + k] = 1, else 0.
    cls = jax.lax.broadcasted_iota(jnp.int32, (C, C * d), 0)
    col = jax.lax.broadcasted_iota(jnp.int32, (C, C * d), 1)
    sel = ((col >= cls * d) & (col < (cls + 1) * d)).astype(jnp.float32)

    # Segmented per-class sum over k via a second (small) MXU matmul that also
    # emits the result class-major:  scores[c, n] = sum_k prod[n, c*d+k]
    # TODO(synk): if a bundle dump shows a full vxpose of `prod` here, switch to
    # prod @ sel.T -> (tn, C) and transpose only that small result instead.
    scores = jnp.einsum("cm,nm->cn", sel, prod,
                        preferred_element_type=jnp.float32)          # (C, tn)

    o_ref[...] = scores + s_ref[...]


# One-time probe result: does this jax accept pipeline_mode on pallas_call specs?
_SINGLE_BUFFER_OK = [None]


def _num_tensorcores_per_chip():
    """Best-effort per-chip TensorCore count (v7x has 2, earlier gens have 1)."""
    try:
        kind = (jax.devices()[0].device_kind or "").lower()
        if "v7" in kind:
            return 2
    except Exception:
        pass
    return 1


def _choose_block_n(N, n_cores):
    """Batch tile. Big tiles amortize the ~0.35us per-grid-step overhead; keep
    the grid length a multiple of the TensorCore count so both v7x cores work."""
    cap = 1024
    if N <= cap:
        if n_cores > 1 and N % n_cores == 0 and (N // n_cores) % 128 == 0:
            return N // n_cores      # e.g. N=256 -> grid=(2,) "parallel" on v7x
        return N                     # grid=(1,): no pipeline prologue/epilogue
    # Large batch: biggest 128-row-aligned divisor <= cap; prefer a step count
    # that is a multiple of n_cores.
    for bn in range(cap, 127, -128):
        if N % bn == 0 and (N // bn) % n_cores == 0:
            return bn
    for bn in range(cap, 127, -128):
        if N % bn == 0:
            return bn
    # TODO(synk): pad/mask the batch axis for ragged N instead of one big step.
    return N


def _invariant_kwargs(single_buffer):
    # Constant-index_map operands only need one VMEM buffer (their DMA runs
    # once at step 0); single-buffering halves their resident footprint.
    if single_buffer and hasattr(pl, "Buffered"):
        return {"pipeline_mode": pl.Buffered(1)}
    return {}


def _build_pallas_call(N, d, C, block_n, single_buffer):
    inv = _invariant_kwargs(single_buffer)
    return pl.pallas_call(
        partial(_poly_act_kernel, C, d),
        out_shape=jax.ShapeDtypeStruct((C, N), jnp.float32),
        grid_spec=pltpu.PrefetchScalarGridSpec(
            num_scalar_prefetch=0,
            grid=(N // block_n,),
            in_specs=[
                pl.BlockSpec((block_n, d), lambda i: (i, 0)),        # x tile
                pl.BlockSpec((d, C * d), lambda i: (0, 0), **inv),   # a*W slab (resident)
                pl.BlockSpec((1, C * d), lambda i: (0, 0), **inv),   # b*v slab (resident)
                pl.BlockSpec((C, 1), lambda i: (0, 0), **inv),       # c*Zt[:,-1,-1] (resident)
            ],
            out_specs=pl.BlockSpec((C, block_n), lambda i: (0, i)),  # class-major
        ),
        compiler_params=pltpu.CompilerParams(
            dimension_semantics=("parallel",)),
    )


def multi_class_poly_act(x, Z, Zp, a=0.09, b=0.5, c=0.47, block_n=None):
    """Pallas equivalent of MultiClassPolyAct.forward; returns (C, N) scores."""
    N, d = x.shape
    C = Z.shape[0]
    assert Z.shape == (C, d + 1, d + 1) and Zp.shape == (C, d + 1, d + 1)

    if block_n is None:
        block_n = _choose_block_n(N, _num_tensorcores_per_chip())
    block_n = min(block_n, N)
    assert N % block_n == 0, "N must be a multiple of the batch tile"
    assert block_n == N or block_n % 128 == 0, (
        "partial batch tiles must be 128-row aligned (TPU (8,128) tiling)")

    f32 = jnp.float32

    # ---- plain-JAX glue: symmetrize, split, pre-scale, and lay out params ----
    Zt = (Z - Zp).astype(f32)
    Zt = 0.5 * (Zt + jnp.transpose(Zt, (0, 2, 1)))
    # Wslab[j, c*d + k] = a * W_c[j, k]   -> single wide matmul in the kernel
    Wslab = (a * jnp.transpose(Zt[:, :d, :d], (1, 0, 2))).reshape(d, C * d)
    # vslab[0, c*d + k] = b * v_c[k]      -> folded in as a broadcast bias
    vslab = (b * Zt[:, :d, d]).reshape(1, C * d)
    # s_col[c, 0] = c_coef * Zt[c, -1, -1]
    s_col = (c * Zt[:, d, d]).reshape(C, 1)
    x = x.astype(f32)
    # TODO(synk): pad the class axis so C*d is a 256-lane multiple (v6e/v7x MXU
    # width) and add a class-group grid axis once C*d^2*4 B stops fitting VMEM.

    tries = [True, False] if _SINGLE_BUFFER_OK[0] is None else [_SINGLE_BUFFER_OK[0]]
    err = None
    for sb in tries:
        try:
            out = _build_pallas_call(N, d, C, block_n, sb)(x, Wslab, vslab, s_col)
            _SINGLE_BUFFER_OK[0] = sb
            return out  # (C, N), matches (term_1+term_2+term_3).squeeze(2)
        except Exception as e:  # noqa: BLE001 - retry with default double-buffered specs
            err = e
    raise err


if __name__ == "__main__":
    C, d, N = 4, 32, 256
    a, b, c = 0.09, 0.5, 0.47

    key = jax.random.PRNGKey(0)
    kx, kz, kzp = jax.random.split(key, 3)
    x = jax.random.normal(kx, (N, d), dtype=jnp.float32)
    # Module's 'zero' init would make the output identically zero; use
    # deterministic random values of the same shapes to exercise the math.
    Z = 0.1 * jax.random.normal(kz, (C, d + 1, d + 1), dtype=jnp.float32)
    Zp = 0.1 * jax.random.normal(kzp, (C, d + 1, d + 1), dtype=jnp.float32)

    # block_n=None -> grid=(1,) on v5e/v6e (no pipeline overhead), grid=(2,) on v7x.
    out = jax.block_until_ready(multi_class_poly_act(x, Z, Zp, a, b, c))

    # pure-JAX reference mirroring the PyTorch forward exactly
    Zt = Z - Zp
    Zt = 0.5 * (Zt + jnp.transpose(Zt, (0, 2, 1)))
    term1 = a * jnp.sum(x * jnp.einsum('nd,cde->cne', x, Zt[:, :-1, :-1]), axis=2)
    term2 = b * jnp.einsum('nd,cd->cn', x, Zt[:, :-1, -1])
    term3 = c * Zt[:, -1, -1][:, None]
    ref = term1 + term2 + term3                           # (C, N)

    np.testing.assert_allclose(np.asarray(out), np.asarray(ref), rtol=1e-5, atol=1e-5)
    assert out.shape == (C, N)
    print("KERNEL_OK")
</pallas_src>

<mosaic_0001>
module attributes {stable_mosaic.version = 11 : i64} {
  func.func @_poly_act_kernel(%arg0: i32, %arg1: memref<256x32xf32, #tpu.memory_space<vmem>>, %arg2: memref<32x128xf32, #tpu.memory_space<vmem>>, %arg3: memref<1x128xf32, #tpu.memory_space<vmem>>, %arg4: memref<4x1xf32, #tpu.memory_space<vmem>>, %arg5: memref<4x256xf32, #tpu.memory_space<vmem>>) attributes {dimension_semantics = [#tpu.dimension_semantics<parallel>], iteration_bounds = array<i64: 1>, scalar_prefetch = 0 : i64, scratch_operands = 0 : i64, tpu.core_type = #tpu.core_type<tc>, window_params = [{transform_indices = @transform_0, window_bounds = array<i64: 256, 32>}, {pipeline_mode = #tpu.pipeline_mode<synchronous>, transform_indices = @transform_1, window_bounds = array<i64: 32, 128>}, {pipeline_mode = #tpu.pipeline_mode<synchronous>, transform_indices = @transform_2, window_bounds = array<i64: 1, 128>}, {pipeline_mode = #tpu.pipeline_mode<synchronous>, transform_indices = @transform_3, window_bounds = array<i64: 4, 1>}, {transform_indices = @transform_4, window_bounds = array<i64: 4, 256>}]} {
    %c0 = arith.constant 0 : index
    %c0_0 = arith.constant 0 : index
    %0 = vector.load %arg1[%c0, %c0_0] : memref<256x32xf32, #tpu.memory_space<vmem>>, vector<256x32xf32>
    %c0_1 = arith.constant 0 : index
    %c0_2 = arith.constant 0 : index
    %1 = vector.load %arg2[%c0_1, %c0_2] : memref<32x128xf32, #tpu.memory_space<vmem>>, vector<32x128xf32>
    %cst = arith.constant dense<0.000000e+00> : vector<256x128xf32>
    %2 = tpu.matmul %0, %1, %cst {dimension_numbers = #tpu.dot_dimension_numbers<[1], [0], [0], [1], [0, 0, 1, 1], [], []>} : vector<256x32xf32>, vector<32x128xf32>, vector<256x128xf32> -> vector<256x128xf32>
    %c0_3 = arith.constant 0 : index
    %c0_4 = arith.constant 0 : index
    %3 = vector.load %arg3[%c0_3, %c0_4] : memref<1x128xf32, #tpu.memory_space<vmem>>, vector<1x128xf32>
    %4 = vector.broadcast %3 : vector<1x128xf32> to vector<256x128xf32>
    %5 = arith.addf %2, %4 : vector<256x128xf32>
    %6 = tpu.concatenate %0, %0, %0, %0 in 1 : vector<256x32xf32>, vector<256x32xf32>, vector<256x32xf32>, vector<256x32xf32> -> vector<256x128xf32>
    %7 = arith.mulf %6, %5 : vector<256x128xf32>
    %8 = tpu.iota {dimensions = array<i32: 0>} : vector<4x128xi32>
    %9 = tpu.iota {dimensions = array<i32: 1>} : vector<4x128xi32>
    %c32_i32 = arith.constant 32 : i32
    %10 = vector.broadcast %c32_i32 : i32 to vector<4x128xi32>
    %11 = arith.muli %8, %10 : vector<4x128xi32>
    %12 = arith.cmpi sge, %9, %11 : vector<4x128xi32>
    %c1_i32 = arith.constant 1 : i32
    %13 = vector.broadcast %c1_i32 : i32 to vector<4x128xi32>
    %14 = arith.addi %8, %13 : vector<4x128xi32>
    %c32_i32_5 = arith.constant 32 : i32
    %15 = vector.broadcast %c32_i32_5 : i32 to vector<4x128xi32>
    %16 = arith.muli %14, %15 : vector<4x128xi32>
    %17 = arith.cmpi slt, %9, %16 : vector<4x128xi32>
    %18 = arith.andi %12, %17 : vector<4x128xi1>
    %19 = arith.extui %18 : vector<4x128xi1> to vector<4x128xi32>
    %20 = arith.sitofp %19 : vector<4x128xi32> to vector<4x128xf32>
    "tpu.trace_start"() <{level = 10 : i32, message = "cm,nm->cn"}> : () -> ()
    %cst_6 = arith.constant dense<0.000000e+00> : vector<4x256xf32>
    %21 = tpu.matmul %20, %7, %cst_6 {dimension_numbers = #tpu.dot_dimension_numbers<[1], [1], [0], [0], [0, 0, 1, 0], [], []>} : vector<4x128xf32>, vector<256x128xf32>, vector<4x256xf32> -> vector<4x256xf32>
    "tpu.trace_stop"() : () -> ()
    %c0_7 = arith.constant 0 : index
    %c0_8 = arith.constant 0 : index
    %22 = vector.load %arg4[%c0_7, %c0_8] : memref<4x1xf32, #tpu.memory_space<vmem>>, vector<4x1xf32>
    %23 = vector.broadcast %22 : vector<4x1xf32> to vector<4x256xf32>
    %24 = arith.addf %21, %23 : vector<4x256xf32>
    %c0_9 = arith.constant 0 : index
    %c0_10 = arith.constant 0 : index
    %25 = vector.load %arg5[%c0_9, %c0_10] : memref<4x256xf32, #tpu.memory_space<vmem>>, vector<4x256xf32>
    tpu.vector_store %arg5[%c0_9, %c0_10], %24 {strides = array<i32>} : memref<4x256xf32, #tpu.memory_space<vmem>>, vector<4x256xf32>,
    return
  }
  func.func @transform_0(%arg0: i32) -> (i32, i32) {
    %c0_i32 = arith.constant 0 : i32
    %c0_i32_0 = arith.constant 0 : i32
    return %arg0, %c0_i32 : i32, i32
  }
  func.func @transform_1(%arg0: i32) -> (i32, i32) {
    %c0_i32 = arith.constant 0 : i32
    %c0_i32_0 = arith.constant 0 : i32
    %c0_i32_1 = arith.constant 0 : i32
    return %c0_i32, %c0_i32_0 : i32, i32
  }
  func.func @transform_2(%arg0: i32) -> (i32, i32) {
    %c0_i32 = arith.constant 0 : i32
    %c0_i32_0 = arith.constant 0 : i32
    %c0_i32_1 = arith.constant 0 : i32
    return %c0_i32, %c0_i32_0 : i32, i32
  }
  func.func @transform_3(%arg0: i32) -> (i32, i32) {
    %c0_i32 = arith.constant 0 : i32
    %c0_i32_0 = arith.constant 0 : i32
    %c0_i32_1 = arith.constant 0 : i32
    return %c0_i32, %c0_i32_0 : i32, i32
  }
  func.func @transform_4(%arg0: i32) -> (i32, i32) {
    %c0_i32 = arith.constant 0 : i32
    %c0_i32_0 = arith.constant 0 : i32
    return %c0_i32, %arg0 : i32, i32
  }
}

module attributes {stable_mosaic.version = 11 : i64} {
  func.func @_poly_act_kernel(%arg0: i32, %arg1: memref<256x32xf32, #tpu.memory_space<vmem>>, %arg2: memref<32x128xf32, #tpu.memory_space<vmem>>, %arg3: memref<1x128xf32, #tpu.memory_space<vmem>>, %arg4: memref<4x1xf32, #tpu.memory_space<vmem>>, %arg5: memref<4x256xf32, #tpu.memory_space<vmem>>) attributes {dimension_semantics = [#tpu.dimension_semantics<parallel>], iteration_bounds = array<i64: 1>, scalar_prefetch = 0 : i64, scratch_operands = 0 : i64, tpu.core_type = #tpu.core_type<tc>, window_params = [{transform_indices = @transform_0, window_bounds = array<i64: 256, 32>}, {pipeline_mode = #tpu.pipeline_mode<synchronous>, transform_indices = @transform_1, window_bounds = array<i64: 32, 128>}, {pipeline_mode = #tpu.pipeline_mode<synchronous>, transform_indices = @transform_2, window_bounds = array<i64: 1, 128>}, {pipeline_mode = #tpu.pipeline_mode<synchronous>, transform_indices = @transform_3, window_bounds = array<i64: 4, 1>}, {transform_indices = @transform_4, window_bounds = array<i64: 4, 256>}]} {
    %c0 = arith.constant 0 : index
    %c0_0 = arith.constant 0 : index
    %0 = vector.load %arg1[%c0, %c0_0] : memref<256x32xf32, #tpu.memory_space<vmem>>, vector<256x32xf32>
    %c0_1 = arith.constant 0 : index
    %c0_2 = arith.constant 0 : index
    %1 = vector.load %arg2[%c0_1, %c0_2] : memref<32x128xf32, #tpu.memory_space<vmem>>, vector<32x128xf32>
    %cst = arith.constant dense<0.000000e+00> : vector<256x128xf32>
    %2 = tpu.matmul %0, %1, %cst {dimension_numbers = #tpu.dot_dimension_numbers<[1], [0], [0], [1], [0, 0, 1, 1], [], []>} : vector<256x32xf32>, vector<32x128xf32>, vector<256x128xf32> -> vector<256x128xf32>
    %c0_3 = arith.constant 0 : index
    %c0_4 = arith.constant 0 : index
    %3 = vector.load %arg3[%c0_3, %c0_4] : memref<1x128xf32, #tpu.memory_space<vmem>>, vector<1x128xf32>
    %4 = vector.broadcast %3 : vector<1x128xf32> to vector<256x128xf32>
    %5 = arith.addf %2, %4 : vector<256x128xf32>
    %6 = tpu.concatenate %0, %0, %0, %0 in 1 : vector<256x32xf32>, vector<256x32xf32>, vector<256x32xf32>, vector<256x32xf32> -> vector<256x128xf32>
    %7 = arith.mulf %6, %5 : vector<256x128xf32>
    %8 = tpu.iota {dimensions = array<i32: 0>} : vector<4x128xi32>
    %9 = tpu.iota {dimensions = array<i32: 1>} : vector<4x128xi32>
    %c32_i32 = arith.constant 32 : i32
    %10 = vector.broadcast %c32_i32 : i32 to vector<4x128xi32>
    %11 = arith.muli %8, %10 : vector<4x128xi32>
    %12 = arith.cmpi sge, %9, %11 : vector<4x128xi32>
    %c1_i32 = arith.constant 1 : i32
    %13 = vector.broadcast %c1_i32 : i32 to vector<4x128xi32>
    %14 = arith.addi %8, %13 : vector<4x128xi32>
    %c32_i32_5 = arith.constant 32 : i32
    %15 = vector.broadcast %c32_i32_5 : i32 to vector<4x128xi32>
    %16 = arith.muli %14, %15 : vector<4x128xi32>
    %17 = arith.cmpi slt, %9, %16 : vector<4x128xi32>
    %18 = arith.andi %12, %17 : vector<4x128xi1>
    %19 = arith.extui %18 : vector<4x128xi1> to vector<4x128xi32>
    %20 = arith.sitofp %19 : vector<4x128xi32> to vector<4x128xf32>
    "tpu.trace_start"() <{level = 10 : i32, message = "cm,nm->cn"}> : () -> ()
    %cst_6 = arith.constant dense<0.000000e+00> : vector<4x256xf32>
    %21 = tpu.matmul %20, %7, %cst_6 {dimension_numbers = #tpu.dot_dimension_numbers<[1], [1], [0], [0], [0, 0, 1, 0], [], []>} : vector<4x128xf32>, vector<256x128xf32>, vector<4x256xf32> -> vector<4x256xf32>
    "tpu.trace_stop"() : () -> ()
    %c0_7 = arith.constant 0 : index
    %c0_8 = arith.constant 0 : index
    %22 = vector.load %arg4[%c0_7, %c0_8] : memref<4x1xf32, #tpu.memory_space<vmem>>, vector<4x1xf32>
    %23 = vector.broadcast %22 : vector<4x1xf32> to vector<4x256xf32>
    %24 = arith.addf %21, %23 : vector<4x256xf32>
    %c0_9 = arith.constant 0 : index
    %c0_10 = arith.constant 0 : index
    %25 = vector.load %arg5[%c0_9, %c0_10] : memref<4x256xf32, #tpu.memory_space<vmem>>, vector<4x256xf32>
    tpu.vector_store %arg5[%c0_9, %c0_10], %24 {strides = array<i32>} : memref<4x256xf32, #tpu.memory_space<vmem>>, vector<4x256xf32>,
    return
  }
  func.func @transform_0(%arg0: i32) -> (i32, i32) {
    %c0_i32 = arith.constant 0 : i32
    %c0_i32_0 = arith.constant 0 : i32
    return %arg0, %c0_i32 : i32, i32
  }
  func.func @transform_1(%arg0: i32) -> (i32, i32) {
    %c0_i32 = arith.constant 0 : i32
    %c0_i32_0 = arith.constant 0 : i32
    %c0_i32_1 = arith.constant 0 : i32
    return %c0_i32, %c0_i32_0 : i32, i32
  }
  func.func @transform_2(%arg0: i32) -> (i32, i32) {
    %c0_i32 = arith.constant 0 : i32
    %c0_i32_0 = arith.constant 0 : i32
    %c0_i32_1 = arith.constant 0 : i32
    return %c0_i32, %c0_i32_0 : i32, i32
  }
  func.func @transform_3(%arg0: i32) -> (i32, i32) {
    %c0_i32 = arith.constant 0 : i32
    %c0_i32_0 = arith.constant 0 : i32
    %c0_i32_1 = arith.constant 0 : i32
    return %c0_i32, %c0_i32_0 : i32, i32
  }
  func.func @transform_4(%arg0: i32) -> (i32, i32) {
    %c0_i32 = arith.constant 0 : i32
    %c0_i32_0 = arith.constant 0 : i32
    return %c0_i32, %arg0 : i32, i32
  }
}

</mosaic_0001>

<llo_original>
// kernel: tpu_custom_call.1
$region0: #{tpu_custom_call.1}
  #allocation0 [shape = 'u32[]', space=smem, size = 0x4, offset = 0x4, fixed_abs, tag = 'smem constant byte address 0x4 - core index']
  #allocation1 [shape = 'u32[144,128]{1,0:T(1,128)}', space=vmem, size = 0x12000, scoped, tag = 'internal scratch']
  %s0 = inlined_call_operand.vmem [shape: f32[256,32], index: 0, kind: input, shape index: {}]
  %s1 = inlined_call_operand.vmem [shape: f32[32,128], index: 1, kind: input, shape index: {}]
  %s2 = inlined_call_operand.vmem [shape: f32[1,128], index: 2, kind: input, shape index: {}]
  %s3 = inlined_call_operand.vmem [shape: f32[4,1], index: 3, kind: input, shape index: {}]
  %s4 = inlined_call_operand.hbm [shape: f32[4,256], index: 4, kind: output, shape index: {}]
  %s5 = sld [smem:[#allocation0]]
  $region26: #{tpu_custom_call.1} parent=0
    _
  %s7 = ssub.s32 1, %s5
  %s8 = scalar_select 0, %s7, %s5
  $region1: #{tpu_custom_call.1} parent=0
    #allocation2 [shape = 'u8[4096]{0}', space=vmem, size = 0x1000, scoped, tag = 'output window, operand 0, single buffered']
    #allocation3 [shape = 's32[1]{0}', space=sflag, size = 0x4, scoped, tag = 'scoped memory for tpu_custom_call.1']
    %9 = vsyncpa [#allocation3], 0
    // Predicated region
    $region2: #{tpu_custom_call.1} parent=1 // pred_check
      _
    $region3: #{tpu_custom_call.1} parent=1 // pred_check_branch
      %11 = sbr.rel (0) target = $region5
    $region4: #{tpu_custom_call.1} parent=1 // pred_region
      _
    $region5: #{tpu_custom_call.1} parent=1 // pred_fallthru
      _
    // Predicated region
    $region6: #{tpu_custom_call.1} parent=1 // pred_check
      _
    $region7: #{tpu_custom_call.1} parent=1 // pred_check_branch
      %13 = sbr.rel (0) target = $region9
    $region8: #{tpu_custom_call.1} parent=1 // pred_region
      _
    $region9: #{tpu_custom_call.1} parent=1 // pred_fallthru
      _
    // Predicated region
    $region10: #{tpu_custom_call.1} parent=1 // pred_check
      _
    $region11: #{tpu_custom_call.1} parent=1 // pred_check_branch
      %15 = sbr.rel (0) target = $region13
    $region12: #{tpu_custom_call.1} parent=1 // pred_region
      _
    $region13: #{tpu_custom_call.1} parent=1 // pred_fallthru
      _
    // Predicated region
    $region14: #{tpu_custom_call.1} parent=1 // pred_check
      _
    $region15: #{tpu_custom_call.1} parent=1 // pred_check_branch
      %17 = sbr.rel (0) target = $region17
    $region16: #{tpu_custom_call.1} parent=1 // pred_region
      _
    $region17: #{tpu_custom_call.1} parent=1 // pred_fallthru
      _
    %v18 = vld [vmem:[%s0] sm:$0xff]
    %v19 = vld [vmem:[%s0 + $0x8] sm:$0xff]
    %v20 = vld [vmem:[%s0 + $0x10] sm:$0xff]
    %v21 = vld [vmem:[%s0 + $0x18] sm:$0xff]
    %v22 = vld [vmem:[%s0 + $0x20] sm:$0xff]
    %v23 = vld [vmem:[%s0 + $0x28] sm:$0xff]
    %v24 = vld [vmem:[%s0 + $0x30] sm:$0xff]
    %v25 = vld [vmem:[%s0 + $0x38] sm:$0xff]
    %v26 = vld [vmem:[%s0 + $0x40] sm:$0xff]
    %v27 = vld [vmem:[%s0 + $0x48] sm:$0xff]
    %v28 = vld [vmem:[%s0 + $0x50] sm:$0xff]
    %v29 = vld [vmem:[%s0 + $0x58] sm:$0xff]
    %v30 = vld [vmem:[%s0 + $0x60] sm:$0xff]
    %v31 = vld [vmem:[%s0 + $0x68] sm:$0xff]
    %v32 = vld [vmem:[%s0 + $0x70] sm:$0xff]
    %v33 = vld [vmem:[%s0 + $0x78] sm:$0xff]
    %v34 = vld [vmem:[%s0 + $0x80] sm:$0xff]
    %v35 = vld [vmem:[%s0 + $0x88] sm:$0xff]
    %v36 = vld [vmem:[%s0 + $0x90] sm:$0xff]
    %v37 = vld [vmem:[%s0 + $0x98] sm:$0xff]
    %v38 = vld [vmem:[%s0 + $0xa0] sm:$0xff]
    %v39 = vld [vmem:[%s0 + $0xa8] sm:$0xff]
    %v40 = vld [vmem:[%s0 + $0xb0] sm:$0xff]
    %v41 = vld [vmem:[%s0 + $0xb8] sm:$0xff]
    %v42 = vld [vmem:[%s0 + $0xc0] sm:$0xff]
    %v43 = vld [vmem:[%s0 + $0xc8] sm:$0xff]
    %v44 = vld [vmem:[%s0 + $0xd0] sm:$0xff]
    %v45 = vld [vmem:[%s0 + $0xd8] sm:$0xff]
    %v46 = vld [vmem:[%s0 + $0xe0] sm:$0xff]
    %v47 = vld [vmem:[%s0 + $0xe8] sm:$0xff]
    %v48 = vld [vmem:[%s0 + $0xf0] sm:$0xff]
    %v49 = vld [vmem:[%s0 + $0xf8] sm:$0xff]
    %v50 = vld [vmem:[%s1] sm:$0xff]
    %v51 = vld [vmem:[%s1 + $0x8] sm:$0xff]
    %v52 = vld [vmem:[%s1 + $0x10] sm:$0xff]
    %v53 = vld [vmem:[%s1 + $0x18] sm:$0xff]
    %v54 = vld [vmem:[%s2] sm:$0x1]
    %v56 = vlaneseq
    %v57 = vshrl.u32 %v56, 7
    %v58 = vsub.s32 0, %v57
    %v59 = vrot.slane %v54, %v58
    %vm61 = vcmask 261120
    %v63 = vsel %vm61, %v18, 0
    %v66 = vsel %vm61, %v19, 0
    %v69 = vsel %vm61, %v20, 0
    %v72 = vsel %vm61, %v21, 0
    %v75 = vsel %vm61, %v22, 0
    %v78 = vsel %vm61, %v23, 0
    %v81 = vsel %vm61, %v24, 0
    %v84 = vsel %vm61, %v25, 0
    %v87 = vsel %vm61, %v26, 0
    %v90 = vsel %vm61, %v27, 0
    %v93 = vsel %vm61, %v28, 0
    %v96 = vsel %vm61, %v29, 0
    %v99 = vsel %vm61, %v30, 0
    %v102 = vsel %vm61, %v31, 0
    %v105 = vsel %vm61, %v32, 0
    %v108 = vsel %vm61, %v33, 0
    %v111 = vsel %vm61, %v34, 0
    %v114 = vsel %vm61, %v35, 0
    %v117 = vsel %vm61, %v36, 0
    %v120 = vsel %vm61, %v37, 0
    %v123 = vsel %vm61, %v38, 0
    %v126 = vsel %vm61, %v39, 0
    %v129 = vsel %vm61, %v40, 0
    %v132 = vsel %vm61, %v41, 0
    %v135 = vsel %vm61, %v42, 0
    %v138 = vsel %vm61, %v43, 0
    %v141 = vsel %vm61, %v44, 0
    %v144 = vsel %vm61, %v45, 0
    %v147 = vsel %vm61, %v46, 0
    %v150 = vsel %vm61, %v47, 0
    %v153 = vsel %vm61, %v48, 0
    %v156 = vsel %vm61, %v49, 0
    %158 = vmatprep.subr.mxu0 0.0
    %159 = vmatpush1.msra.mxu0 %v50
    %160 = vmatprep.subr.mxu0 0.0
    %161 = vmatpush1.msra.mxu0 %v51
    %162 = vmatprep.subr.mxu0 0.0
    %163 = vmatpush1.msra.mxu0 %v52
    %164 = vmatprep.subr.mxu0 0.0
    %165 = vmatpush1.msra.mxu0 %v53
    %166 = vmatprep.subr.mxu0 0.0
    %167 = vmatpush1.msra.mxu0 0.0
    %168 = vmatprep.subr.mxu0 0.0
    %169 = vmatpush1.msra.mxu0 0.0
    %170 = vmatprep.subr.mxu0 0.0
    %171 = vmatpush1.msra.mxu0 0.0
    %172 = vmatprep.subr.mxu0 0.0
    %173 = vmatpush1.msra.mxu0 0.0
    %174 = vmatprep.subr.mxu0 0.0
    %175 = vmatpush1.msra.mxu0 0.0
    %176 = vmatprep.subr.mxu0 0.0
    %177 = vmatpush1.msra.mxu0 0.0
    %178 = vmatprep.subr.mxu0 0.0
    %179 = vmatpush1.msra.mxu0 0.0
    %180 = vmatprep.subr.mxu0 0.0
    %181 = vmatpush1.msra.mxu0 0.0
    %182 = vmatprep.subr.mxu0 0.0
    %183 = vmatpush1.msra.mxu0 0.0
    %184 = vmatprep.subr.mxu0 0.0
    %185 = vmatpush1.msra.mxu0 0.0
    %186 = vmatprep.subr.mxu0 0.0
    %187 = vmatpush1.msra.mxu0 0.0
    %188 = vmatprep.subr.mxu0 0.0
    %189 = vmatpush1.msra.mxu0 0.0
    %190 = vmatprep.subr.mxu0 0.0
    %191 = vmatpush1.msra.mxu0 0.0
    %192 = vmatprep.subr.mxu0 0.0
    %193 = vmatpush1.msra.mxu0 0.0
    %194 = vmatprep.subr.mxu0 0.0
    %195 = vmatpush1.msra.mxu0 0.0
    %196 = vmatprep.subr.mxu0 0.0
    %197 = vmatpush1.msra.mxu0 0.0
    %198 = vmatprep.subr.mxu0 0.0
    %199 = vmatpush1.msra.mxu0 0.0
    %200 = vmatprep.subr.mxu0 0.0
    %201 = vmatpush1.msra.mxu0 0.0
    %202 = vmatprep.subr.mxu0 0.0
    %203 = vmatpush1.msra.mxu0 0.0
    %204 = vmatprep.subr.mxu0 0.0
    %205 = vmatpush1.msra.mxu0 0.0
    %206 = vmatprep.subr.mxu0 0.0
    %207 = vmatpush1.msra.mxu0 0.0
    %208 = vmatprep.subr.mxu0 0.0
    %209 = vmatpush1.msra.mxu0 0.0
    %210 = vmatprep.subr.mxu0 0.0
    %211 = vmatpush1.msra.mxu0 0.0
    %212 = vmatprep.subr.mxu0 0.0
    %213 = vmatpush1.msra.mxu0 0.0
    %214 = vmatprep.subr.mxu0 0.0
    %215 = vmatpush1.msra.mxu0 0.0
    %216 = vmatprep.subr.mxu0 0.0
    %217 = vmatpush1.msra.mxu0 0.0
    %218 = vmatprep.subr.mxu0 0.0
    %219 = vmatpush1.msra.mxu0 0.0
    %220 = vmatprep.subr.mxu0 0.0
    %221 = vmatpush1.msra.mxu0 0.0
    %222 = vmatprep.mubr.f32.mxu0 0.0
    %223 = vmatmul.mubr.f32.gmra.mrb[0].mxu0 %v63
    %v224 = vpop.f32.mrb[0].mxu0
    %v225 = vadd.f32 %v59, %v224
    %v226 = vpop.f32.mrb[0].mxu0
    %227 = vmatprep.mubr.f32.mxu0 0.0
    %228 = vmatmul.mubr.f32.gmra.mrb[0].mxu0 %v66
    %v229 = vpop.f32.mrb[0].mxu0
    %v230 = vadd.f32 %v59, %v229
    %v231 = vpop.f32.mrb[0].mxu0
    %232 = vmatprep.mubr.f32.mxu0 0.0
    %233 = vmatmul.mubr.f32.gmra.mrb[0].mxu0 %v69
    %v234 = vpop.f32.mrb[0].mxu0
    %v235 = vadd.f32 %v59, %v234
    %v236 = vpop.f32.mrb[0].mxu0
    %237 = vmatprep.mubr.f32.mxu0 0.0
    %238 = vmatmul.mubr.f32.gmra.mrb[0].mxu0 %v72
    %v239 = vpop.f32.mrb[0].mxu0
    %v240 = vadd.f32 %v59, %v239
    %v241 = vpop.f32.mrb[0].mxu0
    %242 = vmatprep.mubr.f32.mxu0 0.0
    %243 = vmatmul.mubr.f32.gmra.mrb[0].mxu0 %v75
    %v244 = vpop.f32.mrb[0].mxu0
    %v245 = vadd.f32 %v59, %v244
    %v246 = vpop.f32.mrb[0].mxu0
    %247 = vmatprep.mubr.f32.mxu0 0.0
    %248 = vmatmul.mubr.f32.gmra.mrb[0].mxu0 %v78
    %v249 = vpop.f32.mrb[0].mxu0
    %v250 = vadd.f32 %v59, %v249
    %v251 = vpop.f32.mrb[0].mxu0
    %252 = vmatprep.mubr.f32.mxu0 0.0
    %253 = vmatmul.mubr.f32.gmra.mrb[0].mxu0 %v81
    %v254 = vpop.f32.mrb[0].mxu0
    %v255 = vadd.f32 %v59, %v254
    %v256 = vpop.f32.mrb[0].mxu0
    %257 = vmatprep.mubr.f32.mxu0 0.0
    %258 = vmatmul.mubr.f32.gmra.mrb[0].mxu0 %v84
    %v259 = vpop.f32.mrb[0].mxu0
    %v260 = vadd.f32 %v59, %v259
    %v261 = vpop.f32.mrb[0].mxu0
    %262 = vmatprep.mubr.f32.mxu0 0.0
    %263 = vmatmul.mubr.f32.gmra.mrb[0].mxu0 %v87
    %v264 = vpop.f32.mrb[0].mxu0
    %v265 = vadd.f32 %v59, %v264
    %v266 = vpop.f32.mrb[0].mxu0
    %267 = vmatprep.mubr.f32.mxu0 0.0
    %268 = vmatmul.mubr.f32.gmra.mrb[0].mxu0 %v90
    %v269 = vpop.f32.mrb[0].mxu0
    %v270 = vadd.f32 %v59, %v269
    %v271 = vpop.f32.mrb[0].mxu0
    %272 = vmatprep.mubr.f32.mxu0 0.0
    %273 = vmatmul.mubr.f32.gmra.mrb[0].mxu0 %v93
    %v274 = vpop.f32.mrb[0].mxu0
    %v275 = vadd.f32 %v59, %v274
    %v276 = vpop.f32.mrb[0].mxu0
    %277 = vmatprep.mubr.f32.mxu0 0.0
    %278 = vmatmul.mubr.f32.gmra.mrb[0].mxu0 %v96
    %v279 = vpop.f32.mrb[0].mxu0
    %v280 = vadd.f32 %v59, %v279
    %v281 = vpop.f32.mrb[0].mxu0
    %282 = vmatprep.mubr.f32.mxu0 0.0
    %283 = vmatmul.mubr.f32.gmra.mrb[0].mxu0 %v99
    %v284 = vpop.f32.mrb[0].mxu0
    %v285 = vadd.f32 %v59, %v284
    %v286 = vpop.f32.mrb[0].mxu0
    %287 = vmatprep.mubr.f32.mxu0 0.0
    %288 = vmatmul.mubr.f32.gmra.mrb[0].mxu0 %v102
    %v289 = vpop.f32.mrb[0].mxu0
    %v290 = vadd.f32 %v59, %v289
    %v291 = vpop.f32.mrb[0].mxu0
    %292 = vmatprep.mubr.f32.mxu0 0.0
    %293 = vmatmul.mubr.f32.gmra.mrb[0].mxu0 %v105
    %v294 = vpop.f32.mrb[0].mxu0
    %v295 = vadd.f32 %v59, %v294
    %v296 = vpop.f32.mrb[0].mxu0
    %297 = vmatprep.mubr.f32.mxu0 0.0
    %298 = vmatmul.mubr.f32.gmra.mrb[0].mxu0 %v108
    %v299 = vpop.f32.mrb[0].mxu0
    %v300 = vadd.f32 %v59, %v299
    %v301 = vpop.f32.mrb[0].mxu0
    %302 = vmatprep.mubr.f32.mxu0 0.0
    %303 = vmatmul.mubr.f32.gmra.mrb[0].mxu0 %v111
    %v304 = vpop.f32.mrb[0].mxu0
    %v305 = vadd.f32 %v59, %v304
    %v306 = vpop.f32.mrb[0].mxu0
    %307 = vmatprep.mubr.f32.mxu0 0.0
    %308 = vmatmul.mubr.f32.gmra.mrb[0].mxu0 %v114
    %v309 = vpop.f32.mrb[0].mxu0
    %v310 = vadd.f32 %v59, %v309
    %v311 = vpop.f32.mrb[0].mxu0
    %312 = vmatprep.mubr.f32.mxu0 0.0
    %313 = vmatmul.mubr.f32.gmra.mrb[0].mxu0 %v117
    %v314 = vpop.f32.mrb[0].mxu0
    %v315 = vadd.f32 %v59, %v314
    %v316 = vpop.f32.mrb[0].mxu0
    %317 = vmatprep.mubr.f32.mxu0 0.0
    %318 = vmatmul.mubr.f32.gmra.mrb[0].mxu0 %v120
    %v319 = vpop.f32.mrb[0].mxu0
    %v320 = vadd.f32 %v59, %v319
    %v321 = vpop.f32.mrb[0].mxu0
    %322 = vmatprep.mubr.f32.mxu0 0.0
    %323 = vmatmul.mubr.f32.gmra.mrb[0].mxu0 %v123
    %v324 = vpop.f32.mrb[0].mxu0
    %v325 = vadd.f32 %v59, %v324
    %v326 = vpop.f32.mrb[0].mxu0
    %327 = vmatprep.mubr.f32.mxu0 0.0
    %328 = vmatmul.mubr.f32.gmra.mrb[0].mxu0 %v126
    %v329 = vpop.f32.mrb[0].mxu0
    %v330 = vadd.f32 %v59, %v329
    %v331 = vpop.f32.mrb[0].mxu0
    %332 = vmatprep.mubr.f32.mxu0 0.0
    %333 = vmatmul.mubr.f32.gmra.mrb[0].mxu0 %v129
    %v334 = vpop.f32.mrb[0].mxu0
    %v335 = vadd.f32 %v59, %v334
    %v336 = vpop.f32.mrb[0].mxu0
    %337 = vmatprep.mubr.f32.mxu0 0.0
    %338 = vmatmul.mubr.f32.gmra.mrb[0].mxu0 %v132
    %v339 = vpop.f32.mrb[0].mxu0
    %v340 = vadd.f32 %v59, %v339
    %v341 = vpop.f32.mrb[0].mxu0
    %342 = vmatprep.mubr.f32.mxu0 0.0
    %343 = vmatmul.mubr.f32.gmra.mrb[0].mxu0 %v135
    %v344 = vpop.f32.mrb[0].mxu0
    %v345 = vadd.f32 %v59, %v344
    %v346 = vpop.f32.mrb[0].mxu0
    %347 = vmatprep.mubr.f32.mxu0 0.0
    %348 = vmatmul.mubr.f32.gmra.mrb[0].mxu0 %v138
    %v349 = vpop.f32.mrb[0].mxu0
    %v350 = vadd.f32 %v59, %v349
    %v351 = vpop.f32.mrb[0].mxu0
    %352 = vmatprep.mubr.f32.mxu0 0.0
    %353 = vmatmul.mubr.f32.gmra.mrb[0].mxu0 %v141
    %v354 = vpop.f32.mrb[0].mxu0
    %v355 = vadd.f32 %v59, %v354
    %v356 = vpop.f32.mrb[0].mxu0
    %357 = vmatprep.mubr.f32.mxu0 0.0
    %358 = vmatmul.mubr.f32.gmra.mrb[0].mxu0 %v144
    %v359 = vpop.f32.mrb[0].mxu0
    %v360 = vadd.f32 %v59, %v359
    %v361 = vpop.f32.mrb[0].mxu0
    %362 = vmatprep.mubr.f32.mxu0 0.0
    %363 = vmatmul.mubr.f32.gmra.mrb[0].mxu0 %v147
    %v364 = vpop.f32.mrb[0].mxu0
    %v365 = vadd.f32 %v59, %v364
    %v366 = vpop.f32.mrb[0].mxu0
    %367 = vmatprep.mubr.f32.mxu0 0.0
    %368 = vmatmul.mubr.f32.gmra.mrb[0].mxu0 %v150
    %v369 = vpop.f32.mrb[0].mxu0
    %v370 = vadd.f32 %v59, %v369
    %v371 = vpop.f32.mrb[0].mxu0
    %372 = vmatprep.mubr.f32.mxu0 0.0
    %373 = vmatmul.mubr.f32.gmra.mrb[0].mxu0 %v153
    %v374 = vpop.f32.mrb[0].mxu0
    %v375 = vadd.f32 %v59, %v374
    %v376 = vpop.f32.mrb[0].mxu0
    %377 = vmatprep.mubr.f32.mxu0 0.0
    %378 = vmatmul.mubr.f32.gmra.mrb[0].mxu0 %v156
    %v379 = vpop.f32.mrb[0].mxu0
    %v380 = vadd.f32 %v59, %v379
    %v381 = vpop.f32.mrb[0].mxu0
    %382 = vdwg.mxu0
    %383 = vrot.lane.b32.xlu0 %v18, 32
    %v384 = vpop.permute.xlu0 %383
    %385 = vrot.lane.b32.xlu0 %v19, 32
    %v386 = vpop.permute.xlu0 %385
    %387 = vrot.lane.b32.xlu0 %v20, 32
    %v388 = vpop.permute.xlu0 %387
    %389 = vrot.lane.b32.xlu0 %v21, 32
    %v390 = vpop.permute.xlu0 %389
    %391 = vrot.lane.b32.xlu0 %v22, 32
    %v392 = vpop.permute.xlu0 %391
    %393 = vrot.lane.b32.xlu0 %v23, 32
    %v394 = vpop.permute.xlu0 %393
    %395 = vrot.lane.b32.xlu0 %v24, 32
    %v396 = vpop.permute.xlu0 %395
    %397 = vrot.lane.b32.xlu0 %v25, 32
    %v398 = vpop.permute.xlu0 %397
    %399 = vrot.lane.b32.xlu0 %v26, 32
    %v400 = vpop.permute.xlu0 %399
    %401 = vrot.lane.b32.xlu0 %v27, 32
    %v402 = vpop.permute.xlu0 %401
    %403 = vrot.lane.b32.xlu0 %v28, 32
    %v404 = vpop.permute.xlu0 %403
    %405 = vrot.lane.b32.xlu0 %v29, 32
    %v406 = vpop.permute.xlu0 %405
    %407 = vrot.lane.b32.xlu0 %v30, 32
    %v408 = vpop.permute.xlu0 %407
    %409 = vrot.lane.b32.xlu0 %v31, 32
    %v410 = vpop.permute.xlu0 %409
    %411 = vrot.lane.b32.xlu0 %v32, 32
    %v412 = vpop.permute.xlu0 %411
    %413 = vrot.lane.b32.xlu0 %v33, 32
    %v414 = vpop.permute.xlu0 %413
    %415 = vrot.lane.b32.xlu0 %v34, 32
    %v416 = vpop.permute.xlu0 %415
    %417 = vrot.lane.b32.xlu0 %v35, 32
    %v418 = vpop.permute.xlu0 %417
    %419 = vrot.lane.b32.xlu0 %v36, 32
    %v420 = vpop.permute.xlu0 %419
    %421 = vrot.lane.b32.xlu0 %v37, 32
    %v422 = vpop.permute.xlu0 %421
    %423 = vrot.lane.b32.xlu0 %v38, 32
    %v424 = vpop.permute.xlu0 %423
    %425 = vrot.lane.b32.xlu0 %v39, 32
    %v426 = vpop.permute.xlu0 %425
    %427 = vrot.lane.b32.xlu0 %v40, 32
    %v428 = vpop.permute.xlu0 %427
    %429 = vrot.lane.b32.xlu0 %v41, 32
    %v430 = vpop.permute.xlu0 %429
    %431 = vrot.lane.b32.xlu0 %v42, 32
    %v432 = vpop.permute.xlu0 %431
    %433 = vrot.lane.b32.xlu0 %v43, 32
    %v434 = vpop.permute.xlu0 %433
    %435 = vrot.lane.b32.xlu0 %v44, 32
    %v436 = vpop.permute.xlu0 %435
    %437 = vrot.lane.b32.xlu0 %v45, 32
    %v438 = vpop.permute.xlu0 %437
    %439 = vrot.lane.b32.xlu0 %v46, 32
    %v440 = vpop.permute.xlu0 %439
    %441 = vrot.lane.b32.xlu0 %v47, 32
    %v442 = vpop.permute.xlu0 %441
    %443 = vrot.lane.b32.xlu0 %v48, 32
    %v444 = vpop.permute.xlu0 %443
    %445 = vrot.lane.b32.xlu0 %v49, 32
    %v446 = vpop.permute.xlu0 %445
    %479 = vrot.lane.b32.xlu0 %v18, 64
    %v480 = vpop.permute.xlu0 %479
    %481 = vrot.lane.b32.xlu0 %v19, 64
    %v482 = vpop.permute.xlu0 %481
    %483 = vrot.lane.b32.xlu0 %v20, 64
    %v484 = vpop.permute.xlu0 %483
    %485 = vrot.lane.b32.xlu0 %v21, 64
    %v486 = vpop.permute.xlu0 %485
    %487 = vrot.lane.b32.xlu0 %v22, 64
    %v488 = vpop.permute.xlu0 %487
    %489 = vrot.lane.b32.xlu0 %v23, 64
    %v490 = vpop.permute.xlu0 %489
    %491 = vrot.lane.b32.xlu0 %v24, 64
    %v492 = vpop.permute.xlu0 %491
    %493 = vrot.lane.b32.xlu0 %v25, 64
    %v494 = vpop.permute.xlu0 %493
    %495 = vrot.lane.b32.xlu0 %v26, 64
    %v496 = vpop.permute.xlu0 %495
    %497 = vrot.lane.b32.xlu0 %v27, 64
    %v498 = vpop.permute.xlu0 %497
    %499 = vrot.lane.b32.xlu0 %v28, 64
    %v500 = vpop.permute.xlu0 %499
    %501 = vrot.lane.b32.xlu0 %v29, 64
    %v502 = vpop.permute.xlu0 %501
    %503 = vrot.lane.b32.xlu0 %v30, 64
    %v504 = vpop.permute.xlu0 %503
    %505 = vrot.lane.b32.xlu0 %v31, 64
    %v506 = vpop.permute.xlu0 %505
    %507 = vrot.lane.b32.xlu0 %v32, 64
    %v508 = vpop.permute.xlu0 %507
    %509 = vrot.lane.b32.xlu0 %v33, 64
    %v510 = vpop.permute.xlu0 %509
    %511 = vrot.lane.b32.xlu0 %v34, 64
    %v512 = vpop.permute.xlu0 %511
    %513 = vrot.lane.b32.xlu0 %v35, 64
    %v514 = vpop.permute.xlu0 %513
    %515 = vrot.lane.b32.xlu0 %v36, 64
    %v516 = vpop.permute.xlu0 %515
    %517 = vrot.lane.b32.xlu0 %v37, 64
    %v518 = vpop.permute.xlu0 %517
    %519 = vrot.lane.b32.xlu0 %v38, 64
    %v520 = vpop.permute.xlu0 %519
    %521 = vrot.lane.b32.xlu0 %v39, 64
    %v522 = vpop.permute.xlu0 %521
    %523 = vrot.lane.b32.xlu0 %v40, 64
    %v524 = vpop.permute.xlu0 %523
    %525 = vrot.lane.b32.xlu0 %v41, 64
    %v526 = vpop.permute.xlu0 %525
    %527 = vrot.lane.b32.xlu0 %v42, 64
    %v528 = vpop.permute.xlu0 %527
    %529 = vrot.lane.b32.xlu0 %v43, 64
    %v530 = vpop.permute.xlu0 %529
    %531 = vrot.lane.b32.xlu0 %v44, 64
    %v532 = vpop.permute.xlu0 %531
    %533 = vrot.lane.b32.xlu0 %v45, 64
    %v534 = vpop.permute.xlu0 %533
    %535 = vrot.lane.b32.xlu0 %v46, 64
    %v536 = vpop.permute.xlu0 %535
    %537 = vrot.lane.b32.xlu0 %v47, 64
    %v538 = vpop.permute.xlu0 %537
    %539 = vrot.lane.b32.xlu0 %v48, 64
    %v540 = vpop.permute.xlu0 %539
    %541 = vrot.lane.b32.xlu0 %v49, 64
    %v542 = vpop.permute.xlu0 %541
    %575 = vrot.lane.b32.xlu0 %v18, 96
    %v576 = vpop.permute.xlu0 %575
    %577 = vrot.lane.b32.xlu0 %v19, 96
    %v578 = vpop.permute.xlu0 %577
    %579 = vrot.lane.b32.xlu0 %v20, 96
    %v580 = vpop.permute.xlu0 %579
    %581 = vrot.lane.b32.xlu0 %v21, 96
    %v582 = vpop.permute.xlu0 %581
    %583 = vrot.lane.b32.xlu0 %v22, 96
    %v584 = vpop.permute.xlu0 %583
    %585 = vrot.lane.b32.xlu0 %v23, 96
    %v586 = vpop.permute.xlu0 %585
    %587 = vrot.lane.b32.xlu0 %v24, 96
    %v588 = vpop.permute.xlu0 %587
    %589 = vrot.lane.b32.xlu0 %v25, 96
    %v590 = vpop.permute.xlu0 %589
    %591 = vrot.lane.b32.xlu0 %v26, 96
    %v592 = vpop.permute.xlu0 %591
    %593 = vrot.lane.b32.xlu0 %v27, 96
    %v594 = vpop.permute.xlu0 %593
    %595 = vrot.lane.b32.xlu0 %v28, 96
    %v596 = vpop.permute.xlu0 %595
    %597 = vrot.lane.b32.xlu0 %v29, 96
    %v598 = vpop.permute.xlu0 %597
    %599 = vrot.lane.b32.xlu0 %v30, 96
    %v600 = vpop.permute.xlu0 %599
    %601 = vrot.lane.b32.xlu0 %v31, 96
    %v602 = vpop.permute.xlu0 %601
    %603 = vrot.lane.b32.xlu0 %v32, 96
    %v604 = vpop.permute.xlu0 %603
    %605 = vrot.lane.b32.xlu0 %v33, 96
    %v606 = vpop.permute.xlu0 %605
    %607 = vrot.lane.b32.xlu0 %v34, 96
    %v608 = vpop.permute.xlu0 %607
    %609 = vrot.lane.b32.xlu0 %v35, 96
    %v610 = vpop.permute.xlu0 %609
    %611 = vrot.lane.b32.xlu0 %v36, 96
    %v612 = vpop.permute.xlu0 %611
    %613 = vrot.lane.b32.xlu0 %v37, 96
    %v614 = vpop.permute.xlu0 %613
    %615 = vrot.lane.b32.xlu0 %v38, 96
    %v616 = vpop.permute.xlu0 %615
    %617 = vrot.lane.b32.xlu0 %v39, 96
    %v618 = vpop.permute.xlu0 %617
    %619 = vrot.lane.b32.xlu0 %v40, 96
    %v620 = vpop.permute.xlu0 %619
    %621 = vrot.lane.b32.xlu0 %v41, 96
    %v622 = vpop.permute.xlu0 %621
    %623 = vrot.lane.b32.xlu0 %v42, 96
    %v624 = vpop.permute.xlu0 %623
    %625 = vrot.lane.b32.xlu0 %v43, 96
    %v626 = vpop.permute.xlu0 %625
    %627 = vrot.lane.b32.xlu0 %v44, 96
    %v628 = vpop.permute.xlu0 %627
    %629 = vrot.lane.b32.xlu0 %v45, 96
    %v630 = vpop.permute.xlu0 %629
    %631 = vrot.lane.b32.xlu0 %v46, 96
    %v632 = vpop.permute.xlu0 %631
    %633 = vrot.lane.b32.xlu0 %v47, 96
    %v634 = vpop.permute.xlu0 %633
    %635 = vrot.lane.b32.xlu0 %v48, 96
    %v636 = vpop.permute.xlu0 %635
    %637 = vrot.lane.b32.xlu0 %v49, 96
    %v638 = vpop.permute.xlu0 %637
    %v671 = vsel %vm61, %v18, %v384
    %v672 = vsel %vm61, %v19, %v386
    %v673 = vsel %vm61, %v20, %v388
    %v674 = vsel %vm61, %v21, %v390
    %v675 = vsel %vm61, %v22, %v392
    %v676 = vsel %vm61, %v23, %v394
    %v677 = vsel %vm61, %v24, %v396
    %v678 = vsel %vm61, %v25, %v398
    %v679 = vsel %vm61, %v26, %v400
    %v680 = vsel %vm61, %v27, %v402
    %v681 = vsel %vm61, %v28, %v404
    %v682 = vsel %vm61, %v29, %v406
    %v683 = vsel %vm61, %v30, %v408
    %v684 = vsel %vm61, %v31, %v410
    %v685 = vsel %vm61, %v32, %v412
    %v686 = vsel %vm61, %v33, %v414
    %v687 = vsel %vm61, %v34, %v416
    %v688 = vsel %vm61, %v35, %v418
    %v689 = vsel %vm61, %v36, %v420
    %v690 = vsel %vm61, %v37, %v422
    %v691 = vsel %vm61, %v38, %v424
    %v692 = vsel %vm61, %v39, %v426
    %v693 = vsel %vm61, %v40, %v428
    %v694 = vsel %vm61, %v41, %v430
    %v695 = vsel %vm61, %v42, %v432
    %v696 = vsel %vm61, %v43, %v434
    %v697 = vsel %vm61, %v44, %v436
    %v698 = vsel %vm61, %v45, %v438
    %v699 = vsel %vm61, %v46, %v440
    %v700 = vsel %vm61, %v47, %v442
    %v701 = vsel %vm61, %v48, %v444
    %v702 = vsel %vm61, %v49, %v446
    %vm703 = vcmask 523264
    %v704 = vsel %vm703, %v671, %v480
    %v705 = vsel %vm703, %v672, %v482
    %v706 = vsel %vm703, %v673, %v484
    %v707 = vsel %vm703, %v674, %v486
    %v708 = vsel %vm703, %v675, %v488
    %v709 = vsel %vm703, %v676, %v490
    %v710 = vsel %vm703, %v677, %v492
    %v711 = vsel %vm703, %v678, %v494
    %v712 = vsel %vm703, %v679, %v496
    %v713 = vsel %vm703, %v680, %v498
    %v714 = vsel %vm703, %v681, %v500
    %v715 = vsel %vm703, %v682, %v502
    %v716 = vsel %vm703, %v683, %v504
    %v717 = vsel %vm703, %v684, %v506
    %v718 = vsel %vm703, %v685, %v508
    %v719 = vsel %vm703, %v686, %v510
    %v720 = vsel %vm703, %v687, %v512
    %v721 = vsel %vm703, %v688, %v514
    %v722 = vsel %vm703, %v689, %v516
    %v723 = vsel %vm703, %v690, %v518
    %v724 = vsel %vm703, %v691, %v520
    %v725 = vsel %vm703, %v692, %v522
    %v726 = vsel %vm703, %v693, %v524
    %v727 = vsel %vm703, %v694, %v526
    %v728 = vsel %vm703, %v695, %v528
    %v729 = vsel %vm703, %v696, %v530
    %v730 = vsel %vm703, %v697, %v532
    %v731 = vsel %vm703, %v698, %v534
    %v732 = vsel %vm703, %v699, %v536
    %v733 = vsel %vm703, %v700, %v538
    %v734 = vsel %vm703, %v701, %v540
    %v735 = vsel %vm703, %v702, %v542
    %vm736 = vcmask 785408
    %v737 = vsel %vm736, %v704, %v576
    %v738 = vsel %vm736, %v705, %v578
    %v739 = vsel %vm736, %v706, %v580
    %v740 = vsel %vm736, %v707, %v582
    %v741 = vsel %vm736, %v708, %v584
    %v742 = vsel %vm736, %v709, %v586
    %v743 = vsel %vm736, %v710, %v588
    %v744 = vsel %vm736, %v711, %v590
    %v745 = vsel %vm736, %v712, %v592
    %v746 = vsel %vm736, %v713, %v594
    %v747 = vsel %vm736, %v714, %v596
    %v748 = vsel %vm736, %v715, %v598
    %v749 = vsel %vm736, %v716, %v600
    %v750 = vsel %vm736, %v717, %v602
    %v751 = vsel %vm736, %v718, %v604
    %v752 = vsel %vm736, %v719, %v606
    %v753 = vsel %vm736, %v720, %v608
    %v754 = vsel %vm736, %v721, %v610
    %v755 = vsel %vm736, %v722, %v612
    %v756 = vsel %vm736, %v723, %v614
    %v757 = vsel %vm736, %v724, %v616
    %v758 = vsel %vm736, %v725, %v618
    %v759 = vsel %vm736, %v726, %v620
    %v760 = vsel %vm736, %v727, %v622
    %v761 = vsel %vm736, %v728, %v624
    %v762 = vsel %vm736, %v729, %v626
    %v763 = vsel %vm736, %v730, %v628
    %v764 = vsel %vm736, %v731, %v630
    %v765 = vsel %vm736, %v732, %v632
    %v766 = vsel %vm736, %v733, %v634
    %v767 = vsel %vm736, %v734, %v636
    %v768 = vsel %vm736, %v735, %v638
    %v769 = vmul.f32 %v737, %v225
    %v770 = vmul.f32 %v738, %v230
    %v771 = vmul.f32 %v739, %v235
    %v772 = vmul.f32 %v740, %v240
    %v773 = vmul.f32 %v741, %v245
    %v774 = vmul.f32 %v742, %v250
    %v775 = vmul.f32 %v743, %v255
    %v776 = vmul.f32 %v744, %v260
    %v777 = vmul.f32 %v745, %v265
    %v778 = vmul.f32 %v746, %v270
    %v779 = vmul.f32 %v747, %v275
    %v780 = vmul.f32 %v748, %v280
    %v781 = vmul.f32 %v749, %v285
    %v782 = vmul.f32 %v750, %v290
    %v783 = vmul.f32 %v751, %v295
    %v784 = vmul.f32 %v752, %v300
    %v785 = vmul.f32 %v753, %v305
    %v786 = vmul.f32 %v754, %v310
    %v787 = vmul.f32 %v755, %v315
    %v788 = vmul.f32 %v756, %v320
    %v789 = vmul.f32 %v757, %v325
    %v790 = vmul.f32 %v758, %v330
    %v791 = vmul.f32 %v759, %v335
    %v792 = vmul.f32 %v760, %v340
    %v793 = vmul.f32 %v761, %v345
    %v794 = vmul.f32 %v762, %v350
    %v795 = vmul.f32 %v763, %v355
    %v796 = vmul.f32 %v764, %v360
    %v797 = vmul.f32 %v765, %v365
    %v798 = vmul.f32 %v766, %v370
    %v799 = vmul.f32 %v767, %v375
    %v800 = vmul.f32 %v768, %v380
    %v801 = vlaneseq
    %v802 = vshrl.u32 %v801, 7
    %v803 = vlaneseq
    %v804 = vand.u32 %v803, 127
    %v805 = vmul.u32 %v802, 32
    %vm806 = vcmp.ge.s32.totalorder %v804, %v805
    %v807 = vadd.s32 %v802, 1
    %v808 = vmul.u32 %v807, 32
    %vm809 = vcmp.lt.s32.totalorder %v804, %v808
    %vm810 = vmand %vm806, %vm809
    %v811 = vsel %vm810, 1, 0
    %v812 = vcvt.s32.f32 %v811
    %v813 = vld [vmem:[%s3] sm:$0xf]
    %815 = vset.pattern.permute.xlu0 0
    %816 = vperm.xlu0 %815, %v813
    %v817 = vpop.permute.xlu0 %816
    %819 = vmatprep.subr.mxu0 0.0
    %820 = vmatpush1.xpose.msra.mxu0 %v769
    %821 = vmatprep.subr.mxu0 0.0
    %822 = vmatpush1.xpose.msra.mxu0 %v770
    %823 = vmatprep.subr.mxu0 0.0
    %824 = vmatpush1.xpose.msra.mxu0 %v771
    %825 = vmatprep.subr.mxu0 0.0
    %826 = vmatpush1.xpose.msra.mxu0 %v772
    %827 = vmatprep.subr.mxu0 0.0
    %828 = vmatpush1.xpose.msra.mxu0 %v773
    %829 = vmatprep.subr.mxu0 0.0
    %830 = vmatpush1.xpose.msra.mxu0 %v774
    %831 = vmatprep.subr.mxu0 0.0
    %832 = vmatpush1.xpose.msra.mxu0 %v775
    %833 = vmatprep.subr.mxu0 0.0
    %834 = vmatpush1.xpose.msra.mxu0 %v776
    %835 = vmatprep.subr.mxu0 0.0
    %836 = vmatpush1.xpose.msra.mxu0 %v777
    %837 = vmatprep.subr.mxu0 0.0
    %838 = vmatpush1.xpose.msra.mxu0 %v778
    %839 = vmatprep.subr.mxu0 0.0
    %840 = vmatpush1.xpose.msra.mxu0 %v779
    %841 = vmatprep.subr.mxu0 0.0
    %842 = vmatpush1.xpose.msra.mxu0 %v780
    %843 = vmatprep.subr.mxu0 0.0
    %844 = vmatpush1.xpose.msra.mxu0 %v781
    %845 = vmatprep.subr.mxu0 0.0
    %846 = vmatpush1.xpose.msra.mxu0 %v782
    %847 = vmatprep.subr.mxu0 0.0
    %848 = vmatpush1.xpose.msra.mxu0 %v783
    %849 = vmatprep.subr.mxu0 0.0
    %850 = vmatpush1.xpose.msra.mxu0 %v784
    %851 = vmatprep.subr.mxu0 0.0
    %852 = vmatpush1.xpose.msra.mxu0 %v785
    %853 = vmatprep.subr.mxu0 0.0
    %854 = vmatpush1.xpose.msra.mxu0 %v786
    %855 = vmatprep.subr.mxu0 0.0
    %856 = vmatpush1.xpose.msra.mxu0 %v787
    %857 = vmatprep.subr.mxu0 0.0
    %858 = vmatpush1.xpose.msra.mxu0 %v788
    %859 = vmatprep.subr.mxu0 0.0
    %860 = vmatpush1.xpose.msra.mxu0 %v789
    %861 = vmatprep.subr.mxu0 0.0
    %862 = vmatpush1.xpose.msra.mxu0 %v790
    %863 = vmatprep.subr.mxu0 0.0
    %864 = vmatpush1.xpose.msra.mxu0 %v791
    %865 = vmatprep.subr.mxu0 0.0
    %866 = vmatpush1.xpose.msra.mxu0 %v792
    %867 = vmatprep.subr.mxu0 0.0
    %868 = vmatpush1.xpose.msra.mxu0 %v793
    %869 = vmatprep.subr.mxu0 0.0
    %870 = vmatpush1.xpose.msra.mxu0 %v794
    %871 = vmatprep.subr.mxu0 0.0
    %872 = vmatpush1.xpose.msra.mxu0 %v795
    %873 = vmatprep.subr.mxu0 0.0
    %874 = vmatpush1.xpose.msra.mxu0 %v796
    %875 = vmatprep.subr.mxu0 0.0
    %876 = vmatpush1.xpose.msra.mxu0 %v797
    %877 = vmatprep.subr.mxu0 0.0
    %878 = vmatpush1.xpose.msra.mxu0 %v798
    %879 = vmatprep.subr.mxu0 0.0
    %880 = vmatpush1.xpose.msra.mxu0 %v799
    %881 = vmatprep.subr.mxu0 0.0
    %882 = vmatpush1.xpose.msra.mxu0 %v800
    %883 = vmatprep.mubr.f32.mxu0 0.0
    %884 = vmatmul.mubr.f32.gmra.mrb[0].mxu0 %v812
    %v885 = vpop.f32.mrb[0].mxu0
    %v886 = vadd.f32 %v817, %v885
    %v887 = vpop.f32.mrb[0].mxu0
    %v888 = vadd.f32 %v817, %v887
    %889 = vdwg.mxu0
    %v892 = vcombine.low %v886, %v888
    %894 = vst [vmem:[#allocation2] sm:$0xff] %v892
    // Predicated region
    $region18: #{tpu_custom_call.1} parent=1 // pred_check
      _
    $region19: #{tpu_custom_call.1} parent=1 // pred_check_branch
      %896 = sbr.rel (0) target = $region21
    $region20: #{tpu_custom_call.1} parent=1 // pred_region
      %s898 = ssub.s32 128, 128
      %899 = vsyncadd [#allocation3], %s898
      %s901 = sshll.u32 [#allocation2], 4
      %s902 = int_to_ptr.vmem [resolvable:$true] %s901
      %904 = dma.vmem_to_hbm [thread:$0]  %s902, 128, %s4, [#allocation3]
    $region21: #{tpu_custom_call.1} parent=1 // pred_fallthru
      _
    // Predicated region
    $region22: #{tpu_custom_call.1} parent=1 // pred_check
      _
    $region23: #{tpu_custom_call.1} parent=1 // pred_check_branch
      %906 = sbr.rel (0) target = $region25
    $region24: #{tpu_custom_call.1} parent=1 // pred_region
      %907 = dma.done [#allocation3], 128
    $region25: #{tpu_custom_call.1} parent=1 // pred_fallthru
      _
    %908 = vsyncpa [#allocation3], 1

// kernel: tpu_custom_call.1
$region0: #{tpu_custom_call.1}
  #allocation0 [shape = 'u32[]', space=smem, size = 0x4, offset = 0x4, fixed_abs, tag = 'smem constant byte address 0x4 - core index']
  #allocation1 [shape = 'u32[144,128]{1,0:T(1,128)}', space=vmem, size = 0x12000, scoped, tag = 'internal scratch']
  %s0 = inlined_call_operand.vmem [shape: f32[256,32], index: 0, kind: input, shape index: {}]
  %s1 = inlined_call_operand.vmem [shape: f32[32,128], index: 1, kind: input, shape index: {}]
  %s2 = inlined_call_operand.vmem [shape: f32[1,128], index: 2, kind: input, shape index: {}]
  %s3 = inlined_call_operand.vmem [shape: f32[4,1], index: 3, kind: input, shape index: {}]
  %s4 = inlined_call_operand.hbm [shape: f32[4,256], index: 4, kind: output, shape index: {}]
  %s5 = sld [smem:[#allocation0]]
  $region26: #{tpu_custom_call.1} parent=0
    _
  %s7 = ssub.s32 1, %s5
  %s8 = scalar_select 0, %s7, %s5
  $region1: #{tpu_custom_call.1} parent=0
    #allocation2 [shape = 'u8[4096]{0}', space=vmem, size = 0x1000, scoped, tag = 'output window, operand 0, single buffered']
    #allocation3 [shape = 's32[1]{0}', space=sflag, size = 0x4, scoped, tag = 'scoped memory for tpu_custom_call.1']
    %9 = vsyncpa [#allocation3], 0
    // Predicated region
    $region2: #{tpu_custom_call.1} parent=1 // pred_check
      _
    $region3: #{tpu_custom_call.1} parent=1 // pred_check_branch
      %11 = sbr.rel (0) target = $region5
    $region4: #{tpu_custom_call.1} parent=1 // pred_region
      _
    $region5: #{tpu_custom_call.1} parent=1 // pred_fallthru
      _
    // Predicated region
    $region6: #{tpu_custom_call.1} parent=1 // pred_check
      _
    $region7: #{tpu_custom_call.1} parent=1 // pred_check_branch
      %13 = sbr.rel (0) target = $region9
    $region8: #{tpu_custom_call.1} parent=1 // pred_region
      _
    $region9: #{tpu_custom_call.1} parent=1 // pred_fallthru
      _
    // Predicated region
    $region10: #{tpu_custom_call.1} parent=1 // pred_check
      _
    $region11: #{tpu_custom_call.1} parent=1 // pred_check_branch
      %15 = sbr.rel (0) target = $region13
    $region12: #{tpu_custom_call.1} parent=1 // pred_region
      _
    $region13: #{tpu_custom_call.1} parent=1 // pred_fallthru
      _
    // Predicated region
    $region14: #{tpu_custom_call.1} parent=1 // pred_check
      _
    $region15: #{tpu_custom_call.1} parent=1 // pred_check_branch
      %17 = sbr.rel (0) target = $region17
    $region16: #{tpu_custom_call.1} parent=1 // pred_region
      _
    $region17: #{tpu_custom_call.1} parent=1 // pred_fallthru
      _
    %v18 = vld [vmem:[%s0] sm:$0xff]
    %v19 = vld [vmem:[%s0 + $0x8] sm:$0xff]
    %v20 = vld [vmem:[%s0 + $0x10] sm:$0xff]
    %v21 = vld [vmem:[%s0 + $0x18] sm:$0xff]
    %v22 = vld [vmem:[%s0 + $0x20] sm:$0xff]
    %v23 = vld [vmem:[%s0 + $0x28] sm:$0xff]
    %v24 = vld [vmem:[%s0 + $0x30] sm:$0xff]
    %v25 = vld [vmem:[%s0 + $0x38] sm:$0xff]
    %v26 = vld [vmem:[%s0 + $0x40] sm:$0xff]
    %v27 = vld [vmem:[%s0 + $0x48] sm:$0xff]
    %v28 = vld [vmem:[%s0 + $0x50] sm:$0xff]
    %v29 = vld [vmem:[%s0 + $0x58] sm:$0xff]
    %v30 = vld [vmem:[%s0 + $0x60] sm:$0xff]
    %v31 = vld [vmem:[%s0 + $0x68] sm:$0xff]
    %v32 = vld [vmem:[%s0 + $0x70] sm:$0xff]
    %v33 = vld [vmem:[%s0 + $0x78] sm:$0xff]
    %v34 = vld [vmem:[%s0 + $0x80] sm:$0xff]
    %v35 = vld [vmem:[%s0 + $0x88] sm:$0xff]
    %v36 = vld [vmem:[%s0 + $0x90] sm:$0xff]
    %v37 = vld [vmem:[%s0 + $0x98] sm:$0xff]
    %v38 = vld [vmem:[%s0 + $0xa0] sm:$0xff]
    %v39 = vld [vmem:[%s0 + $0xa8] sm:$0xff]
    %v40 = vld [vmem:[%s0 + $0xb0] sm:$0xff]
    %v41 = vld [vmem:[%s0 + $0xb8] sm:$0xff]
    %v42 = vld [vmem:[%s0 + $0xc0] sm:$0xff]
    %v43 = vld [vmem:[%s0 + $0xc8] sm:$0xff]
    %v44 = vld [vmem:[%s0 + $0xd0] sm:$0xff]
    %v45 = vld [vmem:[%s0 + $0xd8] sm:$0xff]
    %v46 = vld [vmem:[%s0 + $0xe0] sm:$0xff]
    %v47 = vld [vmem:[%s0 + $0xe8] sm:$0xff]
    %v48 = vld [vmem:[%s0 + $0xf0] sm:$0xff]
    %v49 = vld [vmem:[%s0 + $0xf8] sm:$0xff]
    %v50 = vld [vmem:[%s1] sm:$0xff]
    %v51 = vld [vmem:[%s1 + $0x8] sm:$0xff]
    %v52 = vld [vmem:[%s1 + $0x10] sm:$0xff]
    %v53 = vld [vmem:[%s1 + $0x18] sm:$0xff]
    %v54 = vld [vmem:[%s2] sm:$0x1]
    %v56 = vlaneseq
    %v57 = vshrl.u32 %v56, 7
    %v58 = vsub.s32 0, %v57
    %v59 = vrot.slane %v54, %v58
    %vm61 = vcmask 261120
    %v63 = vsel %vm61, %v18, 0
    %v66 = vsel %vm61, %v19, 0
    %v69 = vsel %vm61, %v20, 0
    %v72 = vsel %vm61, %v21, 0
    %v75 = vsel %vm61, %v22, 0
    %v78 = vsel %vm61, %v23, 0
    %v81 = vsel %vm61, %v24, 0
    %v84 = vsel %vm61, %v25, 0
    %v87 = vsel %vm61, %v26, 0
    %v90 = vsel %vm61, %v27, 0
    %v93 = vsel %vm61, %v28, 0
    %v96 = vsel %vm61, %v29, 0
    %v99 = vsel %vm61, %v30, 0
    %v102 = vsel %vm61, %v31, 0
    %v105 = vsel %vm61, %v32, 0
    %v108 = vsel %vm61, %v33, 0
    %v111 = vsel %vm61, %v34, 0
    %v114 = vsel %vm61, %v35, 0
    %v117 = vsel %vm61, %v36, 0
    %v120 = vsel %vm61, %v37, 0
    %v123 = vsel %vm61, %v38, 0
    %v126 = vsel %vm61, %v39, 0
    %v129 = vsel %vm61, %v40, 0
    %v132 = vsel %vm61, %v41, 0
    %v135 = vsel %vm61, %v42, 0
    %v138 = vsel %vm61, %v43, 0
    %v141 = vsel %vm61, %v44, 0
    %v144 = vsel %vm61, %v45, 0
    %v147 = vsel %vm61, %v46, 0
    %v150 = vsel %vm61, %v47, 0
    %v153 = vsel %vm61, %v48, 0
    %v156 = vsel %vm61, %v49, 0
    %158 = vmatprep.subr.mxu0 0.0
    %159 = vmatpush1.msra.mxu0 %v50
    %160 = vmatprep.subr.mxu0 0.0
    %161 = vmatpush1.msra.mxu0 %v51
    %162 = vmatprep.subr.mxu0 0.0
    %163 = vmatpush1.msra.mxu0 %v52
    %164 = vmatprep.subr.mxu0 0.0
    %165 = vmatpush1.msra.mxu0 %v53
    %166 = vmatprep.subr.mxu0 0.0
    %167 = vmatpush1.msra.mxu0 0.0
    %168 = vmatprep.subr.mxu0 0.0
    %169 = vmatpush1.msra.mxu0 0.0
    %170 = vmatprep.subr.mxu0 0.0
    %171 = vmatpush1.msra.mxu0 0.0
    %172 = vmatprep.subr.mxu0 0.0
    %173 = vmatpush1.msra.mxu0 0.0
    %174 = vmatprep.subr.mxu0 0.0
    %175 = vmatpush1.msra.mxu0 0.0
    %176 = vmatprep.subr.mxu0 0.0
    %177 = vmatpush1.msra.mxu0 0.0
    %178 = vmatprep.subr.mxu0 0.0
    %179 = vmatpush1.msra.mxu0 0.0
    %180 = vmatprep.subr.mxu0 0.0
    %181 = vmatpush1.msra.mxu0 0.0
    %182 = vmatprep.subr.mxu0 0.0
    %183 = vmatpush1.msra.mxu0 0.0
    %184 = vmatprep.subr.mxu0 0.0
    %185 = vmatpush1.msra.mxu0 0.0
    %186 = vmatprep.subr.mxu0 0.0
    %187 = vmatpush1.msra.mxu0 0.0
    %188 = vmatprep.subr.mxu0 0.0
    %189 = vmatpush1.msra.mxu0 0.0
    %190 = vmatprep.subr.mxu0 0.0
    %191 = vmatpush1.msra.mxu0 0.0
    %192 = vmatprep.subr.mxu0 0.0
    %193 = vmatpush1.msra.mxu0 0.0
    %194 = vmatprep.subr.mxu0 0.0
    %195 = vmatpush1.msra.mxu0 0.0
    %196 = vmatprep.subr.mxu0 0.0
    %197 = vmatpush1.msra.mxu0 0.0
    %198 = vmatprep.subr.mxu0 0.0
    %199 = vmatpush1.msra.mxu0 0.0
    %200 = vmatprep.subr.mxu0 0.0
    %201 = vmatpush1.msra.mxu0 0.0
    %202 = vmatprep.subr.mxu0 0.0
    %203 = vmatpush1.msra.mxu0 0.0
    %204 = vmatprep.subr.mxu0 0.0
    %205 = vmatpush1.msra.mxu0 0.0
    %206 = vmatprep.subr.mxu0 0.0
    %207 = vmatpush1.msra.mxu0 0.0
    %208 = vmatprep.subr.mxu0 0.0
    %209 = vmatpush1.msra.mxu0 0.0
    %210 = vmatprep.subr.mxu0 0.0
    %211 = vmatpush1.msra.mxu0 0.0
    %212 = vmatprep.subr.mxu0 0.0
    %213 = vmatpush1.msra.mxu0 0.0
    %214 = vmatprep.subr.mxu0 0.0
    %215 = vmatpush1.msra.mxu0 0.0
    %216 = vmatprep.subr.mxu0 0.0
    %217 = vmatpush1.msra.mxu0 0.0
    %218 = vmatprep.subr.mxu0 0.0
    %219 = vmatpush1.msra.mxu0 0.0
    %220 = vmatprep.subr.mxu0 0.0
    %221 = vmatpush1.msra.mxu0 0.0
    %222 = vmatprep.mubr.f32.mxu0 0.0
    %223 = vmatmul.mubr.f32.gmra.mrb[0].mxu0 %v63
    %v224 = vpop.f32.mrb[0].mxu0
    %v225 = vadd.f32 %v59, %v224
    %v226 = vpop.f32.mrb[0].mxu0
    %227 = vmatprep.mubr.f32.mxu0 0.0
    %228 = vmatmul.mubr.f32.gmra.mrb[0].mxu0 %v66
    %v229 = vpop.f32.mrb[0].mxu0
    %v230 = vadd.f32 %v59, %v229
    %v231 = vpop.f32.mrb[0].mxu0
    %232 = vmatprep.mubr.f32.mxu0 0.0
    %233 = vmatmul.mubr.f32.gmra.mrb[0].mxu0 %v69
    %v234 = vpop.f32.mrb[0].mxu0
    %v235 = vadd.f32 %v59, %v234
    %v236 = vpop.f32.mrb[0].mxu0
    %237 = vmatprep.mubr.f32.mxu0 0.0
    %238 = vmatmul.mubr.f32.gmra.mrb[0].mxu0 %v72
    %v239 = vpop.f32.mrb[0].mxu0
    %v240 = vadd.f32 %v59, %v239
    %v241 = vpop.f32.mrb[0].mxu0
    %242 = vmatprep.mubr.f32.mxu0 0.0
    %243 = vmatmul.mubr.f32.gmra.mrb[0].mxu0 %v75
    %v244 = vpop.f32.mrb[0].mxu0
    %v245 = vadd.f32 %v59, %v244
    %v246 = vpop.f32.mrb[0].mxu0
    %247 = vmatprep.mubr.f32.mxu0 0.0
    %248 = vmatmul.mubr.f32.gmra.mrb[0].mxu0 %v78
    %v249 = vpop.f32.mrb[0].mxu0
    %v250 = vadd.f32 %v59, %v249
    %v251 = vpop.f32.mrb[0].mxu0
    %252 = vmatprep.mubr.f32.mxu0 0.0
    %253 = vmatmul.mubr.f32.gmra.mrb[0].mxu0 %v81
    %v254 = vpop.f32.mrb[0].mxu0
    %v255 = vadd.f32 %v59, %v254
    %v256 = vpop.f32.mrb[0].mxu0
    %257 = vmatprep.mubr.f32.mxu0 0.0
    %258 = vmatmul.mubr.f32.gmra.mrb[0].mxu0 %v84
    %v259 = vpop.f32.mrb[0].mxu0
    %v260 = vadd.f32 %v59, %v259
    %v261 = vpop.f32.mrb[0].mxu0
    %262 = vmatprep.mubr.f32.mxu0 0.0
    %263 = vmatmul.mubr.f32.gmra.mrb[0].mxu0 %v87
    %v264 = vpop.f32.mrb[0].mxu0
    %v265 = vadd.f32 %v59, %v264
    %v266 = vpop.f32.mrb[0].mxu0
    %267 = vmatprep.mubr.f32.mxu0 0.0
    %268 = vmatmul.mubr.f32.gmra.mrb[0].mxu0 %v90
    %v269 = vpop.f32.mrb[0].mxu0
    %v270 = vadd.f32 %v59, %v269
    %v271 = vpop.f32.mrb[0].mxu0
    %272 = vmatprep.mubr.f32.mxu0 0.0
    %273 = vmatmul.mubr.f32.gmra.mrb[0].mxu0 %v93
    %v274 = vpop.f32.mrb[0].mxu0
    %v275 = vadd.f32 %v59, %v274
    %v276 = vpop.f32.mrb[0].mxu0
    %277 = vmatprep.mubr.f32.mxu0 0.0
    %278 = vmatmul.mubr.f32.gmra.mrb[0].mxu0 %v96
    %v279 = vpop.f32.mrb[0].mxu0
    %v280 = vadd.f32 %v59, %v279
    %v281 = vpop.f32.mrb[0].mxu0
    %282 = vmatprep.mubr.f32.mxu0 0.0
    %283 = vmatmul.mubr.f32.gmra.mrb[0].mxu0 %v99
    %v284 = vpop.f32.mrb[0].mxu0
    %v285 = vadd.f32 %v59, %v284
    %v286 = vpop.f32.mrb[0].mxu0
    %287 = vmatprep.mubr.f32.mxu0 0.0
    %288 = vmatmul.mubr.f32.gmra.mrb[0].mxu0 %v102
    %v289 = vpop.f32.mrb[0].mxu0
    %v290 = vadd.f32 %v59, %v289
    %v291 = vpop.f32.mrb[0].mxu0
    %292 = vmatprep.mubr.f32.mxu0 0.0
    %293 = vmatmul.mubr.f32.gmra.mrb[0].mxu0 %v105
    %v294 = vpop.f32.mrb[0].mxu0
    %v295 = vadd.f32 %v59, %v294
    %v296 = vpop.f32.mrb[0].mxu0
    %297 = vmatprep.mubr.f32.mxu0 0.0
    %298 = vmatmul.mubr.f32.gmra.mrb[0].mxu0 %v108
    %v299 = vpop.f32.mrb[0].mxu0
    %v300 = vadd.f32 %v59, %v299
    %v301 = vpop.f32.mrb[0].mxu0
    %302 = vmatprep.mubr.f32.mxu0 0.0
    %303 = vmatmul.mubr.f32.gmra.mrb[0].mxu0 %v111
    %v304 = vpop.f32.mrb[0].mxu0
    %v305 = vadd.f32 %v59, %v304
    %v306 = vpop.f32.mrb[0].mxu0
    %307 = vmatprep.mubr.f32.mxu0 0.0
    %308 = vmatmul.mubr.f32.gmra.mrb[0].mxu0 %v114
    %v309 = vpop.f32.mrb[0].mxu0
    %v310 = vadd.f32 %v59, %v309
    %v311 = vpop.f32.mrb[0].mxu0
    %312 = vmatprep.mubr.f32.mxu0 0.0
    %313 = vmatmul.mubr.f32.gmra.mrb[0].mxu0 %v117
    %v314 = vpop.f32.mrb[0].mxu0
    %v315 = vadd.f32 %v59, %v314
    %v316 = vpop.f32.mrb[0].mxu0
    %317 = vmatprep.mubr.f32.mxu0 0.0
    %318 = vmatmul.mubr.f32.gmra.mrb[0].mxu0 %v120
    %v319 = vpop.f32.mrb[0].mxu0
    %v320 = vadd.f32 %v59, %v319
    %v321 = vpop.f32.mrb[0].mxu0
    %322 = vmatprep.mubr.f32.mxu0 0.0
    %323 = vmatmul.mubr.f32.gmra.mrb[0].mxu0 %v123
    %v324 = vpop.f32.mrb[0].mxu0
    %v325 = vadd.f32 %v59, %v324
    %v326 = vpop.f32.mrb[0].mxu0
    %327 = vmatprep.mubr.f32.mxu0 0.0
    %328 = vmatmul.mubr.f32.gmra.mrb[0].mxu0 %v126
    %v329 = vpop.f32.mrb[0].mxu0
    %v330 = vadd.f32 %v59, %v329
    %v331 = vpop.f32.mrb[0].mxu0
    %332 = vmatprep.mubr.f32.mxu0 0.0
    %333 = vmatmul.mubr.f32.gmra.mrb[0].mxu0 %v129
    %v334 = vpop.f32.mrb[0].mxu0
    %v335 = vadd.f32 %v59, %v334
    %v336 = vpop.f32.mrb[0].mxu0
    %337 = vmatprep.mubr.f32.mxu0 0.0
    %338 = vmatmul.mubr.f32.gmra.mrb[0].mxu0 %v132
    %v339 = vpop.f32.mrb[0].mxu0
    %v340 = vadd.f32 %v59, %v339
    %v341 = vpop.f32.mrb[0].mxu0
    %342 = vmatprep.mubr.f32.mxu0 0.0
    %343 = vmatmul.mubr.f32.gmra.mrb[0].mxu0 %v135
    %v344 = vpop.f32.mrb[0].mxu0
    %v345 = vadd.f32 %v59, %v344
    %v346 = vpop.f32.mrb[0].mxu0
    %347 = vmatprep.mubr.f32.mxu0 0.0
    %348 = vmatmul.mubr.f32.gmra.mrb[0].mxu0 %v138
    %v349 = vpop.f32.mrb[0].mxu0
    %v350 = vadd.f32 %v59, %v349
    %v351 = vpop.f32.mrb[0].mxu0
    %352 = vmatprep.mubr.f32.mxu0 0.0
    %353 = vmatmul.mubr.f32.gmra.mrb[0].mxu0 %v141
    %v354 = vpop.f32.mrb[0].mxu0
    %v355 = vadd.f32 %v59, %v354
    %v356 = vpop.f32.mrb[0].mxu0
    %357 = vmatprep.mubr.f32.mxu0 0.0
    %358 = vmatmul.mubr.f32.gmra.mrb[0].mxu0 %v144
    %v359 = vpop.f32.mrb[0].mxu0
    %v360 = vadd.f32 %v59, %v359
    %v361 = vpop.f32.mrb[0].mxu0
    %362 = vmatprep.mubr.f32.mxu0 0.0
    %363 = vmatmul.mubr.f32.gmra.mrb[0].mxu0 %v147
    %v364 = vpop.f32.mrb[0].mxu0
    %v365 = vadd.f32 %v59, %v364
    %v366 = vpop.f32.mrb[0].mxu0
    %367 = vmatprep.mubr.f32.mxu0 0.0
    %368 = vmatmul.mubr.f32.gmra.mrb[0].mxu0 %v150
    %v369 = vpop.f32.mrb[0].mxu0
    %v370 = vadd.f32 %v59, %v369
    %v371 = vpop.f32.mrb[0].mxu0
    %372 = vmatprep.mubr.f32.mxu0 0.0
    %373 = vmatmul.mubr.f32.gmra.mrb[0].mxu0 %v153
    %v374 = vpop.f32.mrb[0].mxu0
    %v375 = vadd.f32 %v59, %v374
    %v376 = vpop.f32.mrb[0].mxu0
    %377 = vmatprep.mubr.f32.mxu0 0.0
    %378 = vmatmul.mubr.f32.gmra.mrb[0].mxu0 %v156
    %v379 = vpop.f32.mrb[0].mxu0
    %v380 = vadd.f32 %v59, %v379
    %v381 = vpop.f32.mrb[0].mxu0
    %382 = vdwg.mxu0
    %383 = vrot.lane.b32.xlu0 %v18, 32
    %v384 = vpop.permute.xlu0 %383
    %385 = vrot.lane.b32.xlu0 %v19, 32
    %v386 = vpop.permute.xlu0 %385
    %387 = vrot.lane.b32.xlu0 %v20, 32
    %v388 = vpop.permute.xlu0 %387
    %389 = vrot.lane.b32.xlu0 %v21, 32
    %v390 = vpop.permute.xlu0 %389
    %391 = vrot.lane.b32.xlu0 %v22, 32
    %v392 = vpop.permute.xlu0 %391
    %393 = vrot.lane.b32.xlu0 %v23, 32
    %v394 = vpop.permute.xlu0 %393
    %395 = vrot.lane.b32.xlu0 %v24, 32
    %v396 = vpop.permute.xlu0 %395
    %397 = vrot.lane.b32.xlu0 %v25, 32
    %v398 = vpop.permute.xlu0 %397
    %399 = vrot.lane.b32.xlu0 %v26, 32
    %v400 = vpop.permute.xlu0 %399
    %401 = vrot.lane.b32.xlu0 %v27, 32
    %v402 = vpop.permute.xlu0 %401
    %403 = vrot.lane.b32.xlu0 %v28, 32
    %v404 = vpop.permute.xlu0 %403
    %405 = vrot.lane.b32.xlu0 %v29, 32
    %v406 = vpop.permute.xlu0 %405
    %407 = vrot.lane.b32.xlu0 %v30, 32
    %v408 = vpop.permute.xlu0 %407
    %409 = vrot.lane.b32.xlu0 %v31, 32
    %v410 = vpop.permute.xlu0 %409
    %411 = vrot.lane.b32.xlu0 %v32, 32
    %v412 = vpop.permute.xlu0 %411
    %413 = vrot.lane.b32.xlu0 %v33, 32
    %v414 = vpop.permute.xlu0 %413
    %415 = vrot.lane.b32.xlu0 %v34, 32
    %v416 = vpop.permute.xlu0 %415
    %417 = vrot.lane.b32.xlu0 %v35, 32
    %v418 = vpop.permute.xlu0 %417
    %419 = vrot.lane.b32.xlu0 %v36, 32
    %v420 = vpop.permute.xlu0 %419
    %421 = vrot.lane.b32.xlu0 %v37, 32
    %v422 = vpop.permute.xlu0 %421
    %423 = vrot.lane.b32.xlu0 %v38, 32
    %v424 = vpop.permute.xlu0 %423
    %425 = vrot.lane.b32.xlu0 %v39, 32
    %v426 = vpop.permute.xlu0 %425
    %427 = vrot.lane.b32.xlu0 %v40, 32
    %v428 = vpop.permute.xlu0 %427
    %429 = vrot.lane.b32.xlu0 %v41, 32
    %v430 = vpop.permute.xlu0 %429
    %431 = vrot.lane.b32.xlu0 %v42, 32
    %v432 = vpop.permute.xlu0 %431
    %433 = vrot.lane.b32.xlu0 %v43, 32
    %v434 = vpop.permute.xlu0 %433
    %435 = vrot.lane.b32.xlu0 %v44, 32
    %v436 = vpop.permute.xlu0 %435
    %437 = vrot.lane.b32.xlu0 %v45, 32
    %v438 = vpop.permute.xlu0 %437
    %439 = vrot.lane.b32.xlu0 %v46, 32
    %v440 = vpop.permute.xlu0 %439
    %441 = vrot.lane.b32.xlu0 %v47, 32
    %v442 = vpop.permute.xlu0 %441
    %443 = vrot.lane.b32.xlu0 %v48, 32
    %v444 = vpop.permute.xlu0 %443
    %445 = vrot.lane.b32.xlu0 %v49, 32
    %v446 = vpop.permute.xlu0 %445
    %479 = vrot.lane.b32.xlu0 %v18, 64
    %v480 = vpop.permute.xlu0 %479
    %481 = vrot.lane.b32.xlu0 %v19, 64
    %v482 = vpop.permute.xlu0 %481
    %483 = vrot.lane.b32.xlu0 %v20, 64
    %v484 = vpop.permute.xlu0 %483
    %485 = vrot.lane.b32.xlu0 %v21, 64
    %v486 = vpop.permute.xlu0 %485
    %487 = vrot.lane.b32.xlu0 %v22, 64
    %v488 = vpop.permute.xlu0 %487
    %489 = vrot.lane.b32.xlu0 %v23, 64
    %v490 = vpop.permute.xlu0 %489
    %491 = vrot.lane.b32.xlu0 %v24, 64
    %v492 = vpop.permute.xlu0 %491
    %493 = vrot.lane.b32.xlu0 %v25, 64
    %v494 = vpop.permute.xlu0 %493
    %495 = vrot.lane.b32.xlu0 %v26, 64
    %v496 = vpop.permute.xlu0 %495
    %497 = vrot.lane.b32.xlu0 %v27, 64
    %v498 = vpop.permute.xlu0 %497
    %499 = vrot.lane.b32.xlu0 %v28, 64
    %v500 = vpop.permute.xlu0 %499
    %501 = vrot.lane.b32.xlu0 %v29, 64
    %v502 = vpop.permute.xlu0 %501
    %503 = vrot.lane.b32.xlu0 %v30, 64
    %v504 = vpop.permute.xlu0 %503
    %505 = vrot.lane.b32.xlu0 %v31, 64
    %v506 = vpop.permute.xlu0 %505
    %507 = vrot.lane.b32.xlu0 %v32, 64
    %v508 = vpop.permute.xlu0 %507
    %509 = vrot.lane.b32.xlu0 %v33, 64
    %v510 = vpop.permute.xlu0 %509
    %511 = vrot.lane.b32.xlu0 %v34, 64
    %v512 = vpop.permute.xlu0 %511
    %513 = vrot.lane.b32.xlu0 %v35, 64
    %v514 = vpop.permute.xlu0 %513
    %515 = vrot.lane.b32.xlu0 %v36, 64
    %v516 = vpop.permute.xlu0 %515
    %517 = vrot.lane.b32.xlu0 %v37, 64
    %v518 = vpop.permute.xlu0 %517
    %519 = vrot.lane.b32.xlu0 %v38, 64
    %v520 = vpop.permute.xlu0 %519
    %521 = vrot.lane.b32.xlu0 %v39, 64
    %v522 = vpop.permute.xlu0 %521
    %523 = vrot.lane.b32.xlu0 %v40, 64
    %v524 = vpop.permute.xlu0 %523
    %525 = vrot.lane.b32.xlu0 %v41, 64
    %v526 = vpop.permute.xlu0 %525
    %527 = vrot.lane.b32.xlu0 %v42, 64
    %v528 = vpop.permute.xlu0 %527
    %529 = vrot.lane.b32.xlu0 %v43, 64
    %v530 = vpop.permute.xlu0 %529
    %531 = vrot.lane.b32.xlu0 %v44, 64
    %v532 = vpop.permute.xlu0 %531
    %533 = vrot.lane.b32.xlu0 %v45, 64
    %v534 = vpop.permute.xlu0 %533
    %535 = vrot.lane.b32.xlu0 %v46, 64
    %v536 = vpop.permute.xlu0 %535
    %537 = vrot.lane.b32.xlu0 %v47, 64
    %v538 = vpop.permute.xlu0 %537
    %539 = vrot.lane.b32.xlu0 %v48, 64
    %v540 = vpop.permute.xlu0 %539
    %541 = vrot.lane.b32.xlu0 %v49, 64
    %v542 = vpop.permute.xlu0 %541
    %575 = vrot.lane.b32.xlu0 %v18, 96
    %v576 = vpop.permute.xlu0 %575
    %577 = vrot.lane.b32.xlu0 %v19, 96
    %v578 = vpop.permute.xlu0 %577
    %579 = vrot.lane.b32.xlu0 %v20, 96
    %v580 = vpop.permute.xlu0 %579
    %581 = vrot.lane.b32.xlu0 %v21, 96
    %v582 = vpop.permute.xlu0 %581
    %583 = vrot.lane.b32.xlu0 %v22, 96
    %v584 = vpop.permute.xlu0 %583
    %585 = vrot.lane.b32.xlu0 %v23, 96
    %v586 = vpop.permute.xlu0 %585
    %587 = vrot.lane.b32.xlu0 %v24, 96
    %v588 = vpop.permute.xlu0 %587
    %589 = vrot.lane.b32.xlu0 %v25, 96
    %v590 = vpop.permute.xlu0 %589
    %591 = vrot.lane.b32.xlu0 %v26, 96
    %v592 = vpop.permute.xlu0 %591
    %593 = vrot.lane.b32.xlu0 %v27, 96
    %v594 = vpop.permute.xlu0 %593
    %595 = vrot.lane.b32.xlu0 %v28, 96
    %v596 = vpop.permute.xlu0 %595
    %597 = vrot.lane.b32.xlu0 %v29, 96
    %v598 = vpop.permute.xlu0 %597
    %599 = vrot.lane.b32.xlu0 %v30, 96
    %v600 = vpop.permute.xlu0 %599
    %601 = vrot.lane.b32.xlu0 %v31, 96
    %v602 = vpop.permute.xlu0 %601
    %603 = vrot.lane.b32.xlu0 %v32, 96
    %v604 = vpop.permute.xlu0 %603
    %605 = vrot.lane.b32.xlu0 %v33, 96
    %v606 = vpop.permute.xlu0 %605
    %607 = vrot.lane.b32.xlu0 %v34, 96
    %v608 = vpop.permute.xlu0 %607
    %609 = vrot.lane.b32.xlu0 %v35, 96
    %v610 = vpop.permute.xlu0 %609
    %611 = vrot.lane.b32.xlu0 %v36, 96
    %v612 = vpop.permute.xlu0 %611
    %613 = vrot.lane.b32.xlu0 %v37, 96
    %v614 = vpop.permute.xlu0 %613
    %615 = vrot.lane.b32.xlu0 %v38, 96
    %v616 = vpop.permute.xlu0 %615
    %617 = vrot.lane.b32.xlu0 %v39, 96
    %v618 = vpop.permute.xlu0 %617
    %619 = vrot.lane.b32.xlu0 %v40, 96
    %v620 = vpop.permute.xlu0 %619
    %621 = vrot.lane.b32.xlu0 %v41, 96
    %v622 = vpop.permute.xlu0 %621
    %623 = vrot.lane.b32.xlu0 %v42, 96
    %v624 = vpop.permute.xlu0 %623
    %625 = vrot.lane.b32.xlu0 %v43, 96
    %v626 = vpop.permute.xlu0 %625
    %627 = vrot.lane.b32.xlu0 %v44, 96
    %v628 = vpop.permute.xlu0 %627
    %629 = vrot.lane.b32.xlu0 %v45, 96
    %v630 = vpop.permute.xlu0 %629
    %631 = vrot.lane.b32.xlu0 %v46, 96
    %v632 = vpop.permute.xlu0 %631
    %633 = vrot.lane.b32.xlu0 %v47, 96
    %v634 = vpop.permute.xlu0 %633
    %635 = vrot.lane.b32.xlu0 %v48, 96
    %v636 = vpop.permute.xlu0 %635
    %637 = vrot.lane.b32.xlu0 %v49, 96
    %v638 = vpop.permute.xlu0 %637
    %v671 = vsel %vm61, %v18, %v384
    %v672 = vsel %vm61, %v19, %v386
    %v673 = vsel %vm61, %v20, %v388
    %v674 = vsel %vm61, %v21, %v390
    %v675 = vsel %vm61, %v22, %v392
    %v676 = vsel %vm61, %v23, %v394
    %v677 = vsel %vm61, %v24, %v396
    %v678 = vsel %vm61, %v25, %v398
    %v679 = vsel %vm61, %v26, %v400
    %v680 = vsel %vm61, %v27, %v402
    %v681 = vsel %vm61, %v28, %v404
    %v682 = vsel %vm61, %v29, %v406
    %v683 = vsel %vm61, %v30, %v408
    %v684 = vsel %vm61, %v31, %v410
    %v685 = vsel %vm61, %v32, %v412
    %v686 = vsel %vm61, %v33, %v414
    %v687 = vsel %vm61, %v34, %v416
    %v688 = vsel %vm61, %v35, %v418
    %v689 = vsel %vm61, %v36, %v420
    %v690 = vsel %vm61, %v37, %v422
    %v691 = vsel %vm61, %v38, %v424
    %v692 = vsel %vm61, %v39, %v426
    %v693 = vsel %vm61, %v40, %v428
    %v694 = vsel %vm61, %v41, %v430
    %v695 = vsel %vm61, %v42, %v432
    %v696 = vsel %vm61, %v43, %v434
    %v697 = vsel %vm61, %v44, %v436
    %v698 = vsel %vm61, %v45, %v438
    %v699 = vsel %vm61, %v46, %v440
    %v700 = vsel %vm61, %v47, %v442
    %v701 = vsel %vm61, %v48, %v444
    %v702 = vsel %vm61, %v49, %v446
    %vm703 = vcmask 523264
    %v704 = vsel %vm703, %v671, %v480
    %v705 = vsel %vm703, %v672, %v482
    %v706 = vsel %vm703, %v673, %v484
    %v707 = vsel %vm703, %v674, %v486
    %v708 = vsel %vm703, %v675, %v488
    %v709 = vsel %vm703, %v676, %v490
    %v710 = vsel %vm703, %v677, %v492
    %v711 = vsel %vm703, %v678, %v494
    %v712 = vsel %vm703, %v679, %v496
    %v713 = vsel %vm703, %v680, %v498
    %v714 = vsel %vm703, %v681, %v500
    %v715 = vsel %vm703, %v682, %v502
    %v716 = vsel %vm703, %v683, %v504
    %v717 = vsel %vm703, %v684, %v506
    %v718 = vsel %vm703, %v685, %v508
    %v719 = vsel %vm703, %v686, %v510
    %v720 = vsel %vm703, %v687, %v512
    %v721 = vsel %vm703, %v688, %v514
    %v722 = vsel %vm703, %v689, %v516
    %v723 = vsel %vm703, %v690, %v518
    %v724 = vsel %vm703, %v691, %v520
    %v725 = vsel %vm703, %v692, %v522
    %v726 = vsel %vm703, %v693, %v524
    %v727 = vsel %vm703, %v694, %v526
    %v728 = vsel %vm703, %v695, %v528
    %v729 = vsel %vm703, %v696, %v530
    %v730 = vsel %vm703, %v697, %v532
    %v731 = vsel %vm703, %v698, %v534
    %v732 = vsel %vm703, %v699, %v536
    %v733 = vsel %vm703, %v700, %v538
    %v734 = vsel %vm703, %v701, %v540
    %v735 = vsel %vm703, %v702, %v542
    %vm736 = vcmask 785408
    %v737 = vsel %vm736, %v704, %v576
    %v738 = vsel %vm736, %v705, %v578
    %v739 = vsel %vm736, %v706, %v580
    %v740 = vsel %vm736, %v707, %v582
    %v741 = vsel %vm736, %v708, %v584
    %v742 = vsel %vm736, %v709, %v586
    %v743 = vsel %vm736, %v710, %v588
    %v744 = vsel %vm736, %v711, %v590
    %v745 = vsel %vm736, %v712, %v592
    %v746 = vsel %vm736, %v713, %v594
    %v747 = vsel %vm736, %v714, %v596
    %v748 = vsel %vm736, %v715, %v598
    %v749 = vsel %vm736, %v716, %v600
    %v750 = vsel %vm736, %v717, %v602
    %v751 = vsel %vm736, %v718, %v604
    %v752 = vsel %vm736, %v719, %v606
    %v753 = vsel %vm736, %v720, %v608
    %v754 = vsel %vm736, %v721, %v610
    %v755 = vsel %vm736, %v722, %v612
    %v756 = vsel %vm736, %v723, %v614
    %v757 = vsel %vm736, %v724, %v616
    %v758 = vsel %vm736, %v725, %v618
    %v759 = vsel %vm736, %v726, %v620
    %v760 = vsel %vm736, %v727, %v622
    %v761 = vsel %vm736, %v728, %v624
    %v762 = vsel %vm736, %v729, %v626
    %v763 = vsel %vm736, %v730, %v628
    %v764 = vsel %vm736, %v731, %v630
    %v765 = vsel %vm736, %v732, %v632
    %v766 = vsel %vm736, %v733, %v634
    %v767 = vsel %vm736, %v734, %v636
    %v768 = vsel %vm736, %v735, %v638
    %v769 = vmul.f32 %v737, %v225
    %v770 = vmul.f32 %v738, %v230
    %v771 = vmul.f32 %v739, %v235
    %v772 = vmul.f32 %v740, %v240
    %v773 = vmul.f32 %v741, %v245
    %v774 = vmul.f32 %v742, %v250
    %v775 = vmul.f32 %v743, %v255
    %v776 = vmul.f32 %v744, %v260
    %v777 = vmul.f32 %v745, %v265
    %v778 = vmul.f32 %v746, %v270
    %v779 = vmul.f32 %v747, %v275
    %v780 = vmul.f32 %v748, %v280
    %v781 = vmul.f32 %v749, %v285
    %v782 = vmul.f32 %v750, %v290
    %v783 = vmul.f32 %v751, %v295
    %v784 = vmul.f32 %v752, %v300
    %v785 = vmul.f32 %v753, %v305
    %v786 = vmul.f32 %v754, %v310
    %v787 = vmul.f32 %v755, %v315
    %v788 = vmul.f32 %v756, %v320
    %v789 = vmul.f32 %v757, %v325
    %v790 = vmul.f32 %v758, %v330
    %v791 = vmul.f32 %v759, %v335
    %v792 = vmul.f32 %v760, %v340
    %v793 = vmul.f32 %v761, %v345
    %v794 = vmul.f32 %v762, %v350
    %v795 = vmul.f32 %v763, %v355
    %v796 = vmul.f32 %v764, %v360
    %v797 = vmul.f32 %v765, %v365
    %v798 = vmul.f32 %v766, %v370
    %v799 = vmul.f32 %v767, %v375
    %v800 = vmul.f32 %v768, %v380
    %v801 = vlaneseq
    %v802 = vshrl.u32 %v801, 7
    %v803 = vlaneseq
    %v804 = vand.u32 %v803, 127
    %v805 = vmul.u32 %v802, 32
    %vm806 = vcmp.ge.s32.totalorder %v804, %v805
    %v807 = vadd.s32 %v802, 1
    %v808 = vmul.u32 %v807, 32
    %vm809 = vcmp.lt.s32.totalorder %v804, %v808
    %vm810 = vmand %vm806, %vm809
    %v811 = vsel %vm810, 1, 0
    %v812 = vcvt.s32.f32 %v811
    %v813 = vld [vmem:[%s3] sm:$0xf]
    %815 = vset.pattern.permute.xlu0 0
    %816 = vperm.xlu0 %815, %v813
    %v817 = vpop.permute.xlu0 %816
    %819 = vmatprep.subr.mxu0 0.0
    %820 = vmatpush1.xpose.msra.mxu0 %v769
    %821 = vmatprep.subr.mxu0 0.0
    %822 = vmatpush1.xpose.msra.mxu0 %v770
    %823 = vmatprep.subr.mxu0 0.0
    %824 = vmatpush1.xpose.msra.mxu0 %v771
    %825 = vmatprep.subr.mxu0 0.0
    %826 = vmatpush1.xpose.msra.mxu0 %v772
    %827 = vmatprep.subr.mxu0 0.0
    %828 = vmatpush1.xpose.msra.mxu0 %v773
    %829 = vmatprep.subr.mxu0 0.0
    %830 = vmatpush1.xpose.msra.mxu0 %v774
    %831 = vmatprep.subr.mxu0 0.0
    %832 = vmatpush1.xpose.msra.mxu0 %v775
    %833 = vmatprep.subr.mxu0 0.0
    %834 = vmatpush1.xpose.msra.mxu0 %v776
    %835 = vmatprep.subr.mxu0 0.0
    %836 = vmatpush1.xpose.msra.mxu0 %v777
    %837 = vmatprep.subr.mxu0 0.0
    %838 = vmatpush1.xpose.msra.mxu0 %v778
    %839 = vmatprep.subr.mxu0 0.0
    %840 = vmatpush1.xpose.msra.mxu0 %v779
    %841 = vmatprep.subr.mxu0 0.0
    %842 = vmatpush1.xpose.msra.mxu0 %v780
    %843 = vmatprep.subr.mxu0 0.0
    %844 = vmatpush1.xpose.msra.mxu0 %v781
    %845 = vmatprep.subr.mxu0 0.0
    %846 = vmatpush1.xpose.msra.mxu0 %v782
    %847 = vmatprep.subr.mxu0 0.0
    %848 = vmatpush1.xpose.msra.mxu0 %v783
    %849 = vmatprep.subr.mxu0 0.0
    %850 = vmatpush1.xpose.msra.mxu0 %v784
    %851 = vmatprep.subr.mxu0 0.0
    %852 = vmatpush1.xpose.msra.mxu0 %v785
    %853 = vmatprep.subr.mxu0 0.0
    %854 = vmatpush1.xpose.msra.mxu0 %v786
    %855 = vmatprep.subr.mxu0 0.0
    %856 = vmatpush1.xpose.msra.mxu0 %v787
    %857 = vmatprep.subr.mxu0 0.0
    %858 = vmatpush1.xpose.msra.mxu0 %v788
    %859 = vmatprep.subr.mxu0 0.0
    %860 = vmatpush1.xpose.msra.mxu0 %v789
    %861 = vmatprep.subr.mxu0 0.0
    %862 = vmatpush1.xpose.msra.mxu0 %v790
    %863 = vmatprep.subr.mxu0 0.0
    %864 = vmatpush1.xpose.msra.mxu0 %v791
    %865 = vmatprep.subr.mxu0 0.0
    %866 = vmatpush1.xpose.msra.mxu0 %v792
    %867 = vmatprep.subr.mxu0 0.0
    %868 = vmatpush1.xpose.msra.mxu0 %v793
    %869 = vmatprep.subr.mxu0 0.0
    %870 = vmatpush1.xpose.msra.mxu0 %v794
    %871 = vmatprep.subr.mxu0 0.0
    %872 = vmatpush1.xpose.msra.mxu0 %v795
    %873 = vmatprep.subr.mxu0 0.0
    %874 = vmatpush1.xpose.msra.mxu0 %v796
    %875 = vmatprep.subr.mxu0 0.0
    %876 = vmatpush1.xpose.msra.mxu0 %v797
    %877 = vmatprep.subr.mxu0 0.0
    %878 = vmatpush1.xpose.msra.mxu0 %v798
    %879 = vmatprep.subr.mxu0 0.0
    %880 = vmatpush1.xpose.msra.mxu0 %v799
    %881 = vmatprep.subr.mxu0 0.0
    %882 = vmatpush1.xpose.msra.mxu0 %v800
    %883 = vmatprep.mubr.f32.mxu0 0.0
    %884 = vmatmul.mubr.f32.gmra.mrb[0].mxu0 %v812
    %v885 = vpop.f32.mrb[0].mxu0
    %v886 = vadd.f32 %v817, %v885
    %v887 = vpop.f32.mrb[0].mxu0
    %v888 = vadd.f32 %v817, %v887
    %889 = vdwg.mxu0
    %v892 = vcombine.low %v886, %v888
    %894 = vst [vmem:[#allocation2] sm:$0xff] %v892
    // Predicated region
    $region18: #{tpu_custom_call.1} parent=1 // pred_check
      _
    $region19: #{tpu_custom_call.1} parent=1 // pred_check_branch
      %896 = sbr.rel (0) target = $region21
    $region20: #{tpu_custom_call.1} parent=1 // pred_region
      %s898 = ssub.s32 128, 128
      %899 = vsyncadd [#allocation3], %s898
      %s901 = sshll.u32 [#allocation2], 4
      %s902 = int_to_ptr.vmem [resolvable:$true] %s901
      %904 = dma.vmem_to_hbm [thread:$0]  %s902, 128, %s4, [#allocation3]
    $region21: #{tpu_custom_call.1} parent=1 // pred_fallthru
      _
    // Predicated region
    $region22: #{tpu_custom_call.1} parent=1 // pred_check
      _
    $region23: #{tpu_custom_call.1} parent=1 // pred_check_branch
      %906 = sbr.rel (0) target = $region25
    $region24: #{tpu_custom_call.1} parent=1 // pred_region
      %907 = dma.done [#allocation3], 128
    $region25: #{tpu_custom_call.1} parent=1 // pred_fallthru
      _
    %908 = vsyncpa [#allocation3], 1

</llo_original>
